<compile_context>
chip_gen: v5e
topology: v5e:2x2
jax: 0.10.0
libtpu: 0.0.40
codegen_flags: <defaults>
</compile_context>

<pallas_src>
import functools
import math

import jax
import jax.numpy as jnp
from jax.experimental import pallas as pl
from jax.experimental.pallas import tpu as pltpu

EPSILON = 1e-08  # kept for parity with the module (used in its loss, not the forward)


# ----------------------------------------------------------------------------------
# Helpers
# ----------------------------------------------------------------------------------
def _round_up(n, m):
    return ((n + m - 1) // m) * m


def _pad_to(a, shape):
    return jnp.pad(a, [(0, t - s) for s, t in zip(a.shape, shape)])


# ----------------------------------------------------------------------------------
# Fused kernel: (reparameterize -> linear -> ReLU) x n_shared -> head -> softmax -> mean
# ----------------------------------------------------------------------------------
def _dvcl_kernel(*refs, n_layers, out_pads, n_valid_out, do_softmax, do_mean, num_samples):
    # refs = (x,
    #         Wmean_0, Wlogvar_0, Weps_0, ..., Wmean_{L-1}, Wlogvar_{L-1}, Weps_{L-1},
    #         bmean_all, blogvar_all, beps_all,
    #         out, acc_scratch)
    x_ref = refs[0]
    w_refs = refs[1:1 + 3 * n_layers]
    bm_ref = refs[1 + 3 * n_layers]
    blv_ref = refs[2 + 3 * n_layers]
    beps_ref = refs[3 + 3 * n_layers]
    out_ref = refs[4 + 3 * n_layers]
    acc_ref = refs[5 + 3 * n_layers]

    s = pl.program_id(1)

    h = x_ref[...]  # (bt, K0p) f32
    for l in range(n_layers):
        np_l = out_pads[l]
        w_mu = w_refs[3 * l][...]           # (Kp, Np) f32, loaded once across samples
        w_lv = w_refs[3 * l + 1][...]
        w_eps = w_refs[3 * l + 2][0]        # (Kp, Np) f32, per-sample noise
        # Reparameterization on the VPU/EUP (hidden under the MXU slot).
        w = w_mu + w_eps * jnp.exp(0.5 * w_lv)
        b = (bm_ref[l:l + 1, :np_l]
             + beps_ref[0, l:l + 1, :np_l] * jnp.exp(0.5 * blv_ref[l:l + 1, :np_l]))
        # MXU in bf16, accumulate in f32.
        acc = jnp.dot(h.astype(jnp.bfloat16), w.astype(jnp.bfloat16),
                      preferred_element_type=jnp.float32)
        h = acc + b
        if l < n_layers - 1:
            h = jnp.maximum(h, 0.0)

    if do_softmax:
        # Mask padded class lanes so they do not pollute the softmax denominator.
        col = jax.lax.broadcasted_iota(jnp.int32, h.shape, 1)
        h = jnp.where(col < n_valid_out, h, -1e30)
        m = jnp.max(h, axis=-1, keepdims=True)
        e = jnp.exp(h - m)
        h = e * pl.reciprocal(jnp.sum(e, axis=-1, keepdims=True), approx=True)

    if do_mean:
        @pl.when(s == 0)
        def _():
            acc_ref[...] = jnp.zeros_like(acc_ref)

        acc_ref[...] += h

        @pl.when(s == num_samples - 1)
        def _():
            out_ref[...] = acc_ref[...] * (1.0 / num_samples)
    else:
        out_ref[0] = h


# ----------------------------------------------------------------------------------
# Wrapper: pad, build specs, launch ONE pallas_call for all MC samples
# ----------------------------------------------------------------------------------
@functools.partial(
    jax.jit,
    static_argnames=("num_samples", "sample_parameters", "do_softmax", "do_mean"),
)
def dvcl_forward(x, layers, key, *, num_samples, sample_parameters, do_softmax, do_mean):
    """layers: list of dicts (shared layers + selected head last), each with
    W_mean (K,N), W_logvar (K,N), b_mean (N,), b_logvar (N,)."""
    x = x.astype(jnp.float32)
    B = x.shape[0]
    L = len(layers)
    S = int(num_samples)

    d_in = [int(l["W_mean"].shape[0]) for l in layers]
    d_out = [int(l["W_mean"].shape[1]) for l in layers]
    Kp = [_round_up(d, 128) for d in d_in]
    Np = [_round_up(d, 128) for d in d_out]
    Np_max = max(Np)

    Bp = _round_up(B, 8)
    if Bp > 128:
        Bp = _round_up(B, 128)
        bt = 128
    else:
        bt = Bp
    n_b_tiles = Bp // bt

    # Gaussian noise for the reparameterization (zeros => point estimate at the means).
    if sample_parameters:
        keys = jax.random.split(key, 2 * L)
        w_eps = [jax.random.normal(keys[2 * i], (S,) + layers[i]["W_mean"].shape,
                                   dtype=jnp.float32) for i in range(L)]
        b_eps = [jax.random.normal(keys[2 * i + 1], (S,) + layers[i]["b_mean"].shape,
                                   dtype=jnp.float32) for i in range(L)]
    else:
        w_eps = [jnp.zeros((S,) + layers[i]["W_mean"].shape, jnp.float32) for i in range(L)]
        b_eps = [jnp.zeros((S,) + layers[i]["b_mean"].shape, jnp.float32) for i in range(L)]

    operands = [_pad_to(x, (Bp, Kp[0]))]
    in_specs = [pl.BlockSpec((bt, Kp[0]), lambda i, s: (i, 0))]

    for li in range(L):
        wm = _pad_to(layers[li]["W_mean"].astype(jnp.float32), (Kp[li], Np[li]))
        wlv = _pad_to(layers[li]["W_logvar"].astype(jnp.float32), (Kp[li], Np[li]))
        weps = _pad_to(w_eps[li], (S, Kp[li], Np[li]))
        operands += [wm, wlv, weps]
        in_specs += [
            pl.BlockSpec((Kp[li], Np[li]), lambda i, s: (0, 0)),     # loaded once
            pl.BlockSpec((Kp[li], Np[li]), lambda i, s: (0, 0)),     # loaded once
            pl.BlockSpec((1, Kp[li], Np[li]), lambda i, s: (s, 0, 0)),  # streamed per sample
        ]

    # Packed bias operands: one (L, Np_max) slab each instead of L tiny (1, N) refs.
    bm_all = jnp.stack([_pad_to(layers[li]["b_mean"].astype(jnp.float32), (Np_max,))
                        for li in range(L)])
    blv_all = jnp.stack([_pad_to(layers[li]["b_logvar"].astype(jnp.float32), (Np_max,))
                         for li in range(L)])
    beps_all = jnp.stack([_pad_to(b_eps[li], (S, Np_max)) for li in range(L)], axis=1)
    operands += [bm_all, blv_all, beps_all]
    in_specs += [
        pl.BlockSpec((L, Np_max), lambda i, s: (0, 0)),
        pl.BlockSpec((L, Np_max), lambda i, s: (0, 0)),
        pl.BlockSpec((1, L, Np_max), lambda i, s: (s, 0, 0)),
    ]

    if do_mean:
        out_shape = jax.ShapeDtypeStruct((Bp, Np[-1]), jnp.float32)
        out_spec = pl.BlockSpec((bt, Np[-1]), lambda i, s: (i, 0))   # resident accumulator
        dim_sem = ("parallel", "arbitrary")
    else:
        out_shape = jax.ShapeDtypeStruct((S, Bp, Np[-1]), jnp.float32)
        out_spec = pl.BlockSpec((1, bt, Np[-1]), lambda i, s: (s, i, 0))
        dim_sem = ("parallel", "parallel")

    kernel = functools.partial(
        _dvcl_kernel,
        n_layers=L,
        out_pads=tuple(Np),
        n_valid_out=d_out[-1],
        do_softmax=do_softmax,
        do_mean=do_mean,
        num_samples=S,
    )

    out = pl.pallas_call(
        kernel,
        out_shape=out_shape,
        grid_spec=pltpu.PrefetchScalarGridSpec(
            num_scalar_prefetch=0,
            grid=(n_b_tiles, S),
            in_specs=in_specs,
            out_specs=out_spec,
            scratch_shapes=[pltpu.VMEM((bt, Np[-1]), jnp.float32)],
        ),
        compiler_params=pltpu.CompilerParams(
            dimension_semantics=dim_sem,
            vmem_limit_bytes=32 * 1024 * 1024,
        ),
    )(*operands)

    if do_mean:
        return out[:B, :d_out[-1]]
    return out[:, :B, :d_out[-1]]


# ----------------------------------------------------------------------------------
# DiscriminativeVCL-equivalent parameter container + forward (plain JAX glue)
# ----------------------------------------------------------------------------------
class DiscriminativeVCLPallas:
    # TODO(synk): only posterior_type='meanfield' implemented (flow / low-rank variants
    #             and the KL / loss methods are training-only and not translated).
    def __init__(self, x_dim, shared_h_dims, h_dim, n_classes, n_heads,
                 initial_posterior_var, seed=0):
        self.x_dim = x_dim
        self.h_dim = h_dim
        self.y_dim = n_classes
        self.n_heads = n_heads
        self.ipv = initial_posterior_var

        shared_dims = [x_dim] + list(shared_h_dims) + [h_dim]
        key = jax.random.PRNGKey(seed)

        def init_layer(key, d_in, d_out):
            kw, kb = jax.random.split(key)
            W_mean = 0.1 * jax.random.normal(kw, (d_in, d_out), dtype=jnp.float32)
            b_mean = 0.1 * jax.random.normal(kb, (d_out,), dtype=jnp.float32)
            W_logvar = jnp.full((d_in, d_out), math.log(self.ipv), dtype=jnp.float32)
            b_logvar = jnp.full((d_out,), math.log(self.ipv), dtype=jnp.float32)
            return dict(W_mean=W_mean, W_logvar=W_logvar,
                        b_mean=b_mean, b_logvar=b_logvar)

        self.shared_layers = []
        for i in range(len(shared_dims) - 1):
            key, sub = jax.random.split(key)
            self.shared_layers.append(init_layer(sub, shared_dims[i], shared_dims[i + 1]))

        self.heads = []
        for _ in range(n_heads):
            key, sub = jax.random.split(key)
            self.heads.append(init_layer(sub, h_dim, n_classes))

    def forward(self, x, head_idx, key, num_samples=1, sample_parameters=True,
                do_softmax=False, do_mean=False):
        layers = list(self.shared_layers) + [self.heads[head_idx]]
        out = dvcl_forward(x, layers, key,
                           num_samples=int(num_samples),
                           sample_parameters=bool(sample_parameters),
                           do_softmax=bool(do_softmax),
                           do_mean=bool(do_mean))
        if do_mean:
            return out
        return [out[s] for s in range(int(num_samples))]


# ----------------------------------------------------------------------------------
# Pure-JAX reference for correctness check
# ----------------------------------------------------------------------------------
def _ref_one_sample(x, ws, bs, do_softmax):
    h = x
    for w, b in zip(ws[:-1], bs[:-1]):
        h = jnp.maximum(h @ w + b, 0.0)
    logits = h @ ws[-1] + bs[-1]
    if do_softmax:
        logits = jax.nn.softmax(logits, axis=1)
    return logits


if __name__ == "__main__":
    # Small config consistent with the module:
    #   x_dim=32, shared_h_dims=(32,), h_dim=32 -> 2 shared layers
    #   n_classes=8, n_tasks (multiheaded)=2, mc_sampling_n=4, ipv=1e-3
    B = 8
    x_dim, shared_h_dims, h_dim, n_classes, n_heads = 32, (32,), 32, 8, 2
    mc_sampling_n = 4
    head_idx = 1

    model = DiscriminativeVCLPallas(
        x_dim, shared_h_dims, h_dim, n_classes, n_heads,
        initial_posterior_var=1e-3, seed=0,
    )

    key = jax.random.PRNGKey(0)
    kx, kfwd = jax.random.split(key)
    x = jax.random.normal(kx, (B, x_dim), dtype=jnp.float32)

    # prediction()-style pass: all MC samples + per-sample softmax + in-kernel mean,
    # fused into a single pallas_call.
    probs = model.forward(x, head_idx, kfwd, num_samples=mc_sampling_n,
                          sample_parameters=True, do_softmax=True, do_mean=True)
    probs = jax.block_until_ready(probs)
    assert probs.shape == (B, n_classes)
    assert jnp.allclose(jnp.sum(probs, axis=1), 1.0, atol=1e-2)

    # Same key, per-sample outputs: the in-kernel MC mean must match a JAX mean of them.
    per_sample = model.forward(x, head_idx, kfwd, num_samples=mc_sampling_n,
                               sample_parameters=True, do_softmax=True, do_mean=False)
    per_sample = jax.block_until_ready(jnp.stack(per_sample))
    assert per_sample.shape == (mc_sampling_n, B, n_classes)
    assert jnp.allclose(jnp.mean(per_sample, axis=0), probs, atol=1e-4, rtol=1e-4)

    # Deterministic (point-estimate) pass: means only, logits out; compare to JAX reference.
    # (Tolerance loosened for bf16 MXU inputs with f32 accumulation.)
    logits = model.forward(x, head_idx, kfwd, num_samples=1, sample_parameters=False,
                           do_softmax=False, do_mean=False)[0]
    logits = jax.block_until_ready(logits)
    ws_ref = [l["W_mean"] for l in model.shared_layers] + [model.heads[head_idx]["W_mean"]]
    bs_ref = [l["b_mean"] for l in model.shared_layers] + [model.heads[head_idx]["b_mean"]]
    ref_logits = _ref_one_sample(x, ws_ref, bs_ref, do_softmax=False)
    assert logits.shape == (B, n_classes)
    assert jnp.allclose(logits, ref_logits, atol=2e-2, rtol=2e-2)

    print("KERNEL_OK")
</pallas_src>

<mosaic_0001>
module attributes {stable_mosaic.version = 11 : i64} {
  func.func @_dvcl_kernel(%arg0: i32, %arg1: i32, %arg2: memref<8x128xf32, #tpu.memory_space<vmem>>, %arg3: memref<128x128xf32, #tpu.memory_space<vmem>>, %arg4: memref<128x128xf32, #tpu.memory_space<vmem>>, %arg5: memref<1x128x128xf32, #tpu.memory_space<vmem>>, %arg6: memref<128x128xf32, #tpu.memory_space<vmem>>, %arg7: memref<128x128xf32, #tpu.memory_space<vmem>>, %arg8: memref<1x128x128xf32, #tpu.memory_space<vmem>>, %arg9: memref<128x128xf32, #tpu.memory_space<vmem>>, %arg10: memref<128x128xf32, #tpu.memory_space<vmem>>, %arg11: memref<1x128x128xf32, #tpu.memory_space<vmem>>, %arg12: memref<3x128xf32, #tpu.memory_space<vmem>>, %arg13: memref<3x128xf32, #tpu.memory_space<vmem>>, %arg14: memref<1x3x128xf32, #tpu.memory_space<vmem>>, %arg15: memref<8x128xf32, #tpu.memory_space<vmem>>, %arg16: memref<8x128xf32, #tpu.memory_space<vmem>>) attributes {dimension_semantics = [#tpu.dimension_semantics<parallel>, #tpu.dimension_semantics<arbitrary>], iteration_bounds = array<i64: 1, 4>, scalar_prefetch = 0 : i64, scratch_operands = 1 : i64, tpu.core_type = #tpu.core_type<tc>, window_params = [{transform_indices = @transform_0, window_bounds = array<i64: 8, 128>}, {pipeline_mode = #tpu.pipeline_mode<synchronous>, transform_indices = @transform_1, window_bounds = array<i64: 128, 128>}, {pipeline_mode = #tpu.pipeline_mode<synchronous>, transform_indices = @transform_2, window_bounds = array<i64: 128, 128>}, {transform_indices = @transform_3, window_bounds = array<i64: 1, 128, 128>}, {pipeline_mode = #tpu.pipeline_mode<synchronous>, transform_indices = @transform_4, window_bounds = array<i64: 128, 128>}, {pipeline_mode = #tpu.pipeline_mode<synchronous>, transform_indices = @transform_5, window_bounds = array<i64: 128, 128>}, {transform_indices = @transform_6, window_bounds = array<i64: 1, 128, 128>}, {pipeline_mode = #tpu.pipeline_mode<synchronous>, transform_indices = @transform_7, window_bounds = array<i64: 128, 128>}, {pipeline_mode = #tpu.pipeline_mode<synchronous>, transform_indices = @transform_8, window_bounds = array<i64: 128, 128>}, {transform_indices = @transform_9, window_bounds = array<i64: 1, 128, 128>}, {pipeline_mode = #tpu.pipeline_mode<synchronous>, transform_indices = @transform_10, window_bounds = array<i64: 3, 128>}, {pipeline_mode = #tpu.pipeline_mode<synchronous>, transform_indices = @transform_11, window_bounds = array<i64: 3, 128>}, {transform_indices = @transform_12, window_bounds = array<i64: 1, 3, 128>}, {transform_indices = @transform_13, window_bounds = array<i64: 8, 128>}]} {
    %c0 = arith.constant 0 : index
    %c0_0 = arith.constant 0 : index
    %0 = vector.load %arg2[%c0, %c0_0] : memref<8x128xf32, #tpu.memory_space<vmem>>, vector<8x128xf32>
    %c0_1 = arith.constant 0 : index
    %c0_2 = arith.constant 0 : index
    %1 = vector.load %arg3[%c0_1, %c0_2] : memref<128x128xf32, #tpu.memory_space<vmem>>, vector<128x128xf32>
    %c0_3 = arith.constant 0 : index
    %c0_4 = arith.constant 0 : index
    %2 = vector.load %arg4[%c0_3, %c0_4] : memref<128x128xf32, #tpu.memory_space<vmem>>, vector<128x128xf32>
    %c0_5 = arith.constant 0 : index
    %c0_6 = arith.constant 0 : index
    %c0_7 = arith.constant 0 : index
    %3 = vector.load %arg5[%c0_5, %c0_6, %c0_7] : memref<1x128x128xf32, #tpu.memory_space<vmem>>, vector<1x128x128xf32>
    %4 = vector.shape_cast %3 : vector<1x128x128xf32> to vector<128x128xf32>
    %cst = arith.constant 5.000000e-01 : f32
    %5 = vector.broadcast %cst : f32 to vector<128x128xf32>
    %6 = arith.mulf %5, %2 : vector<128x128xf32>
    %7 = math.exp %6 : vector<128x128xf32>
    %8 = arith.mulf %4, %7 : vector<128x128xf32>
    %9 = arith.addf %1, %8 : vector<128x128xf32>
    %c0_8 = arith.constant 0 : index
    %c0_9 = arith.constant 0 : index
    %10 = vector.load %arg12[%c0_8, %c0_9] : memref<3x128xf32, #tpu.memory_space<vmem>>, vector<1x128xf32>
    %c0_10 = arith.constant 0 : index
    %c0_11 = arith.constant 0 : index
    %c0_12 = arith.constant 0 : index
    %11 = vector.load %arg14[%c0_10, %c0_11, %c0_12] : memref<1x3x128xf32, #tpu.memory_space<vmem>>, vector<1x1x128xf32>
    %12 = vector.shape_cast %11 : vector<1x1x128xf32> to vector<1x128xf32>
    %c0_13 = arith.constant 0 : index
    %c0_14 = arith.constant 0 : index
    %13 = vector.load %arg13[%c0_13, %c0_14] : memref<3x128xf32, #tpu.memory_space<vmem>>, vector<1x128xf32>
    %cst_15 = arith.constant 5.000000e-01 : f32
    %14 = vector.broadcast %cst_15 : f32 to vector<1x128xf32>
    %15 = arith.mulf %14, %13 : vector<1x128xf32>
    %16 = math.exp %15 : vector<1x128xf32>
    %17 = arith.mulf %12, %16 : vector<1x128xf32>
    %18 = arith.addf %10, %17 : vector<1x128xf32>
    %19 = arith.truncf %0 : vector<8x128xf32> to vector<8x128xbf16>
    %20 = arith.truncf %9 : vector<128x128xf32> to vector<128x128xbf16>
    %cst_16 = arith.constant dense<0.000000e+00> : vector<8x128xf32>
    %21 = tpu.matmul %19, %20, %cst_16 {dimension_numbers = #tpu.dot_dimension_numbers<[1], [0], [0], [1], [0, 0, 1, 1], [], []>} : vector<8x128xbf16>, vector<128x128xbf16>, vector<8x128xf32> -> vector<8x128xf32>
    %22 = vector.broadcast %18 : vector<1x128xf32> to vector<8x128xf32>
    %23 = arith.addf %21, %22 : vector<8x128xf32>
    %cst_17 = arith.constant 0.000000e+00 : f32
    %24 = vector.broadcast %cst_17 : f32 to vector<8x128xf32>
    %25 = arith.maximumf %23, %24 : vector<8x128xf32>
    %c0_18 = arith.constant 0 : index
    %c0_19 = arith.constant 0 : index
    %26 = vector.load %arg6[%c0_18, %c0_19] : memref<128x128xf32, #tpu.memory_space<vmem>>, vector<128x128xf32>
    %c0_20 = arith.constant 0 : index
    %c0_21 = arith.constant 0 : index
    %27 = vector.load %arg7[%c0_20, %c0_21] : memref<128x128xf32, #tpu.memory_space<vmem>>, vector<128x128xf32>
    %c0_22 = arith.constant 0 : index
    %c0_23 = arith.constant 0 : index
    %c0_24 = arith.constant 0 : index
    %28 = vector.load %arg8[%c0_22, %c0_23, %c0_24] : memref<1x128x128xf32, #tpu.memory_space<vmem>>, vector<1x128x128xf32>
    %29 = vector.shape_cast %28 : vector<1x128x128xf32> to vector<128x128xf32>
    %cst_25 = arith.constant 5.000000e-01 : f32
    %30 = vector.broadcast %cst_25 : f32 to vector<128x128xf32>
    %31 = arith.mulf %30, %27 : vector<128x128xf32>
    %32 = math.exp %31 : vector<128x128xf32>
    %33 = arith.mulf %29, %32 : vector<128x128xf32>
    %34 = arith.addf %26, %33 : vector<128x128xf32>
    %c1 = arith.constant 1 : index
    %c0_26 = arith.constant 0 : index
    %35 = vector.load %arg12[%c1, %c0_26] : memref<3x128xf32, #tpu.memory_space<vmem>>, vector<1x128xf32>
    %c0_27 = arith.constant 0 : index
    %c1_28 = arith.constant 1 : index
    %c0_29 = arith.constant 0 : index
    %36 = vector.load %arg14[%c0_27, %c1_28, %c0_29] : memref<1x3x128xf32, #tpu.memory_space<vmem>>, vector<1x1x128xf32>
    %37 = vector.shape_cast %36 : vector<1x1x128xf32> to vector<1x128xf32>
    %c1_30 = arith.constant 1 : index
    %c0_31 = arith.constant 0 : index
    %38 = vector.load %arg13[%c1_30, %c0_31] : memref<3x128xf32, #tpu.memory_space<vmem>>, vector<1x128xf32>
    %cst_32 = arith.constant 5.000000e-01 : f32
    %39 = vector.broadcast %cst_32 : f32 to vector<1x128xf32>
    %40 = arith.mulf %39, %38 : vector<1x128xf32>
    %41 = math.exp %40 : vector<1x128xf32>
    %42 = arith.mulf %37, %41 : vector<1x128xf32>
    %43 = arith.addf %35, %42 : vector<1x128xf32>
    %44 = arith.truncf %25 : vector<8x128xf32> to vector<8x128xbf16>
    %45 = arith.truncf %34 : vector<128x128xf32> to vector<128x128xbf16>
    %cst_33 = arith.constant dense<0.000000e+00> : vector<8x128xf32>
    %46 = tpu.matmul %44, %45, %cst_33 {dimension_numbers = #tpu.dot_dimension_numbers<[1], [0], [0], [1], [0, 0, 1, 1], [], []>} : vector<8x128xbf16>, vector<128x128xbf16>, vector<8x128xf32> -> vector<8x128xf32>
    %47 = vector.broadcast %43 : vector<1x128xf32> to vector<8x128xf32>
    %48 = arith.addf %46, %47 : vector<8x128xf32>
    %cst_34 = arith.constant 0.000000e+00 : f32
    %49 = vector.broadcast %cst_34 : f32 to vector<8x128xf32>
    %50 = arith.maximumf %48, %49 : vector<8x128xf32>
    %c0_35 = arith.constant 0 : index
    %c0_36 = arith.constant 0 : index
    %51 = vector.load %arg9[%c0_35, %c0_36] : memref<128x128xf32, #tpu.memory_space<vmem>>, vector<128x128xf32>
    %c0_37 = arith.constant 0 : index
    %c0_38 = arith.constant 0 : index
    %52 = vector.load %arg10[%c0_37, %c0_38] : memref<128x128xf32, #tpu.memory_space<vmem>>, vector<128x128xf32>
    %c0_39 = arith.constant 0 : index
    %c0_40 = arith.constant 0 : index
    %c0_41 = arith.constant 0 : index
    %53 = vector.load %arg11[%c0_39, %c0_40, %c0_41] : memref<1x128x128xf32, #tpu.memory_space<vmem>>, vector<1x128x128xf32>
    %54 = vector.shape_cast %53 : vector<1x128x128xf32> to vector<128x128xf32>
    %cst_42 = arith.constant 5.000000e-01 : f32
    %55 = vector.broadcast %cst_42 : f32 to vector<128x128xf32>
    %56 = arith.mulf %55, %52 : vector<128x128xf32>
    %57 = math.exp %56 : vector<128x128xf32>
    %58 = arith.mulf %54, %57 : vector<128x128xf32>
    %59 = arith.addf %51, %58 : vector<128x128xf32>
    %c2 = arith.constant 2 : index
    %c0_43 = arith.constant 0 : index
    %60 = vector.load %arg12[%c2, %c0_43] : memref<3x128xf32, #tpu.memory_space<vmem>>, vector<1x128xf32>
    %c0_44 = arith.constant 0 : index
    %c2_45 = arith.constant 2 : index
    %c0_46 = arith.constant 0 : index
    %61 = vector.load %arg14[%c0_44, %c2_45, %c0_46] : memref<1x3x128xf32, #tpu.memory_space<vmem>>, vector<1x1x128xf32>
    %62 = vector.shape_cast %61 : vector<1x1x128xf32> to vector<1x128xf32>
    %c2_47 = arith.constant 2 : index
    %c0_48 = arith.constant 0 : index
    %63 = vector.load %arg13[%c2_47, %c0_48] : memref<3x128xf32, #tpu.memory_space<vmem>>, vector<1x128xf32>
    %cst_49 = arith.constant 5.000000e-01 : f32
    %64 = vector.broadcast %cst_49 : f32 to vector<1x128xf32>
    %65 = arith.mulf %64, %63 : vector<1x128xf32>
    %66 = math.exp %65 : vector<1x128xf32>
    %67 = arith.mulf %62, %66 : vector<1x128xf32>
    %68 = arith.addf %60, %67 : vector<1x128xf32>
    %69 = arith.truncf %50 : vector<8x128xf32> to vector<8x128xbf16>
    %70 = arith.truncf %59 : vector<128x128xf32> to vector<128x128xbf16>
    %cst_50 = arith.constant dense<0.000000e+00> : vector<8x128xf32>
    %71 = tpu.matmul %69, %70, %cst_50 {dimension_numbers = #tpu.dot_dimension_numbers<[1], [0], [0], [1], [0, 0, 1, 1], [], []>} : vector<8x128xbf16>, vector<128x128xbf16>, vector<8x128xf32> -> vector<8x128xf32>
    %72 = vector.broadcast %68 : vector<1x128xf32> to vector<8x128xf32>
    %73 = arith.addf %71, %72 : vector<8x128xf32>
    %74 = tpu.iota {dimensions = array<i32: 1>} : vector<8x128xi32>
    %c8_i32 = arith.constant 8 : i32
    %75 = vector.broadcast %c8_i32 : i32 to vector<8x128xi32>
    %76 = arith.cmpi slt, %74, %75 : vector<8x128xi32>
    %cst_51 = arith.constant -1.000000e+30 : f32
    %77 = vector.broadcast %cst_51 : f32 to vector<8x128xf32>
    %78 = arith.select %76, %73, %77 : vector<8x128xi1>, vector<8x128xf32>
    %cst_52 = arith.constant dense<0xFF800000> : vector<8xf32>
    %79 = vector.multi_reduction <maximumf>, %78, %cst_52 [1] : vector<8x128xf32> to vector<8xf32>
    %80 = vector.shape_cast %79 : vector<8xf32> to vector<8x1xf32>
    %81 = vector.broadcast %80 : vector<8x1xf32> to vector<8x128xf32>
    %82 = arith.subf %78, %81 : vector<8x128xf32>
    %83 = math.exp %82 : vector<8x128xf32>
    %cst_53 = arith.constant dense<0.000000e+00> : vector<8xf32>
    %84 = vector.multi_reduction <add>, %83, %cst_53 [1] : vector<8x128xf32> to vector<8xf32>
    %85 = vector.shape_cast %84 : vector<8xf32> to vector<8x1xf32>
    %86 = tpu.reciprocal %85 {approx = true} : vector<8x1xf32> -> vector<8x1xf32>
    %87 = vector.broadcast %86 : vector<8x1xf32> to vector<8x128xf32>
    %88 = arith.mulf %83, %87 : vector<8x128xf32>
    %c0_i32 = arith.constant 0 : i32
    %89 = arith.cmpi eq, %arg1, %c0_i32 : i32
    %90 = arith.extui %89 : i1 to i32
    %c0_i32_54 = arith.constant 0 : i32
    %91 = arith.cmpi ne, %90, %c0_i32_54 : i32
    scf.if %91 {
      %cst_60 = arith.constant 0.000000e+00 : f32
      %98 = vector.broadcast %cst_60 : f32 to vector<8x128xf32>
      %c0_61 = arith.constant 0 : index
      %c0_62 = arith.constant 0 : index
      %99 = vector.load %arg16[%c0_61, %c0_62] : memref<8x128xf32, #tpu.memory_space<vmem>>, vector<8x128xf32>
      tpu.vector_store %arg16[%c0_61, %c0_62], %98 {strides = array<i32>} : memref<8x128xf32, #tpu.memory_space<vmem>>, vector<8x128xf32>,
    } else {
    }
    %c0_55 = arith.constant 0 : index
    %c0_56 = arith.constant 0 : index
    %92 = vector.load %arg16[%c0_55, %c0_56] : memref<8x128xf32, #tpu.memory_space<vmem>>, vector<8x128xf32>
    %93 = arith.addf %92, %88 : vector<8x128xf32>
    %c0_57 = arith.constant 0 : index
    %c0_58 = arith.constant 0 : index
    %94 = vector.load %arg16[%c0_57, %c0_58] : memref<8x128xf32, #tpu.memory_space<vmem>>, vector<8x128xf32>
    tpu.vector_store %arg16[%c0_57, %c0_58], %93 {strides = array<i32>} : memref<8x128xf32, #tpu.memory_space<vmem>>, vector<8x128xf32>,
    %c3_i32 = arith.constant 3 : i32
    %95 = arith.cmpi eq, %arg1, %c3_i32 : i32
    %96 = arith.extui %95 : i1 to i32
    %c0_i32_59 = arith.constant 0 : i32
    %97 = arith.cmpi ne, %96, %c0_i32_59 : i32
    scf.if %97 {
      %c0_60 = arith.constant 0 : index
      %c0_61 = arith.constant 0 : index
      %98 = vector.load %arg16[%c0_60, %c0_61] : memref<8x128xf32, #tpu.memory_space<vmem>>, vector<8x128xf32>
      %cst_62 = arith.constant 2.500000e-01 : f32
      %99 = vector.broadcast %cst_62 : f32 to vector<8x128xf32>
      %100 = arith.mulf %98, %99 : vector<8x128xf32>
      %c0_63 = arith.constant 0 : index
      %c0_64 = arith.constant 0 : index
      %101 = vector.load %arg15[%c0_63, %c0_64] : memref<8x128xf32, #tpu.memory_space<vmem>>, vector<8x128xf32>
      tpu.vector_store %arg15[%c0_63, %c0_64], %100 {strides = array<i32>} : memref<8x128xf32, #tpu.memory_space<vmem>>, vector<8x128xf32>,
    } else {
    }
    return
  }
  func.func @transform_0(%arg0: i32, %arg1: i32) -> (i32, i32) {
    %c0_i32 = arith.constant 0 : i32
    %c0_i32_0 = arith.constant 0 : i32
    return %arg0, %c0_i32 : i32, i32
  }
  func.func @transform_1(%arg0: i32, %arg1: i32) -> (i32, i32) {
    %c0_i32 = arith.constant 0 : i32
    %c0_i32_0 = arith.constant 0 : i32
    %c0_i32_1 = arith.constant 0 : i32
    return %c0_i32, %c0_i32_0 : i32, i32
  }
  func.func @transform_2(%arg0: i32, %arg1: i32) -> (i32, i32) {
    %c0_i32 = arith.constant 0 : i32
    %c0_i32_0 = arith.constant 0 : i32
    %c0_i32_1 = arith.constant 0 : i32
    return %c0_i32, %c0_i32_0 : i32, i32
  }
  func.func @transform_3(%arg0: i32, %arg1: i32) -> (i32, i32, i32) {
    %c0_i32 = arith.constant 0 : i32
    %c0_i32_0 = arith.constant 0 : i32
    %c0_i32_1 = arith.constant 0 : i32
    return %arg1, %c0_i32, %c0_i32_0 : i32, i32, i32
  }
  func.func @transform_4(%arg0: i32, %arg1: i32) -> (i32, i32) {
    %c0_i32 = arith.constant 0 : i32
    %c0_i32_0 = arith.constant 0 : i32
    %c0_i32_1 = arith.constant 0 : i32
    return %c0_i32, %c0_i32_0 : i32, i32
  }
  func.func @transform_5(%arg0: i32, %arg1: i32) -> (i32, i32) {
    %c0_i32 = arith.constant 0 : i32
    %c0_i32_0 = arith.constant 0 : i32
    %c0_i32_1 = arith.constant 0 : i32
    return %c0_i32, %c0_i32_0 : i32, i32
  }
  func.func @transform_6(%arg0: i32, %arg1: i32) -> (i32, i32, i32) {
    %c0_i32 = arith.constant 0 : i32
    %c0_i32_0 = arith.constant 0 : i32
    %c0_i32_1 = arith.constant 0 : i32
    return %arg1, %c0_i32, %c0_i32_0 : i32, i32, i32
  }
  func.func @transform_7(%arg0: i32, %arg1: i32) -> (i32, i32) {
    %c0_i32 = arith.constant 0 : i32
    %c0_i32_0 = arith.constant 0 : i32
    %c0_i32_1 = arith.constant 0 : i32
    return %c0_i32, %c0_i32_0 : i32, i32
  }
  func.func @transform_8(%arg0: i32, %arg1: i32) -> (i32, i32) {
    %c0_i32 = arith.constant 0 : i32
    %c0_i32_0 = arith.constant 0 : i32
    %c0_i32_1 = arith.constant 0 : i32
    return %c0_i32, %c0_i32_0 : i32, i32
  }
  func.func @transform_9(%arg0: i32, %arg1: i32) -> (i32, i32, i32) {
    %c0_i32 = arith.constant 0 : i32
    %c0_i32_0 = arith.constant 0 : i32
    %c0_i32_1 = arith.constant 0 : i32
    return %arg1, %c0_i32, %c0_i32_0 : i32, i32, i32
  }
  func.func @transform_10(%arg0: i32, %arg1: i32) -> (i32, i32) {
    %c0_i32 = arith.constant 0 : i32
    %c0_i32_0 = arith.constant 0 : i32
    %c0_i32_1 = arith.constant 0 : i32
    return %c0_i32, %c0_i32_0 : i32, i32
  }
  func.func @transform_11(%arg0: i32, %arg1: i32) -> (i32, i32) {
    %c0_i32 = arith.constant 0 : i32
    %c0_i32_0 = arith.constant 0 : i32
    %c0_i32_1 = arith.constant 0 : i32
    return %c0_i32, %c0_i32_0 : i32, i32
  }
  func.func @transform_12(%arg0: i32, %arg1: i32) -> (i32, i32, i32) {
    %c0_i32 = arith.constant 0 : i32
    %c0_i32_0 = arith.constant 0 : i32
    %c0_i32_1 = arith.constant 0 : i32
    return %arg1, %c0_i32, %c0_i32_0 : i32, i32, i32
  }
  func.func @transform_13(%arg0: i32, %arg1: i32) -> (i32, i32) {
    %c0_i32 = arith.constant 0 : i32
    %c0_i32_0 = arith.constant 0 : i32
    return %arg0, %c0_i32 : i32, i32
  }
}

</mosaic_0001>

<llo_original>
// kernel: dvcl_forward.3
$region0: #{dvcl_forward.3}
  #allocation0 [shape = 'u32[]', space=smem, size = 0x4, offset = 0x4, fixed_abs, tag = 'smem constant byte address 0x4 - core index']
  #allocation1 [shape = 'u32[72,128]{1,0:T(1,128)}', space=vmem, size = 0x9000, scoped, tag = 'internal scratch']
  #allocation2 [shape = 'f32[8,128]{1,0:T(8,128)}', space=vmem, size = 0x1000, scoped, tag = 'scratch operand']
  %s0 = inlined_call_operand.vmem [shape: f32[8,128], index: 0, kind: input, shape index: {}]
  %s1 = inlined_call_operand.vmem [shape: f32[128,128], index: 1, kind: input, shape index: {}]
  %s2 = inlined_call_operand.vmem [shape: f32[128,128], index: 2, kind: input, shape index: {}]
  %s3 = inlined_call_operand.vmem [shape: f32[4,128,128], index: 3, kind: input, shape index: {}]
  %s4 = inlined_call_operand.vmem [shape: f32[128,128], index: 4, kind: input, shape index: {}]
  %s5 = inlined_call_operand.vmem [shape: f32[128,128], index: 5, kind: input, shape index: {}]
  %s6 = inlined_call_operand.vmem [shape: f32[4,128,128], index: 6, kind: input, shape index: {}]
  %s7 = inlined_call_operand.vmem [shape: f32[128,128], index: 7, kind: input, shape index: {}]
  %s8 = inlined_call_operand.vmem [shape: f32[128,128], index: 8, kind: input, shape index: {}]
  %s9 = inlined_call_operand.vmem [shape: f32[4,128,128], index: 9, kind: input, shape index: {}]
  %s10 = inlined_call_operand.vmem [shape: f32[3,128], index: 10, kind: input, shape index: {}]
  %s11 = inlined_call_operand.vmem [shape: f32[3,128], index: 11, kind: input, shape index: {}]
  %s12 = inlined_call_operand.vmem [shape: f32[4,3,128], index: 12, kind: input, shape index: {}]
  %s13 = inlined_call_operand.hbm [shape: f32[8,128], index: 13, kind: output, shape index: {}]
  %s14 = sld [smem:[#allocation0]]
  $region93: #{dvcl_forward.3} parent=0
    _
  %s16 = ssub.s32 1, %s14
  %s17 = scalar_select 0, %s16, %s14
  $region1: #{dvcl_forward.3} parent=0
    #allocation3 [shape = 'u8[4096]{0}', space=vmem, size = 0x1000, scoped, tag = 'output window, operand 0, single buffered']
    #allocation4 [shape = 's32[2]{0}', space=sflag, size = 0x8, scoped, tag = 'scoped memory for dvcl_forward.3']
    %18 = vsyncpa [#allocation4], 0
    loop: start=0, step=1, limit=6
    $region2: #{dvcl_forward.3} parent=1 // loop_pre_header
      _
    $region3: #{dvcl_forward.3} parent=1 // loop_header
      %s20 = sphi 0, %s24
      %p21 = scmp.ge.s32.totalorder %s20, 6
      %s27 = sphi 0, %s39
      %s28 = sphi 0, %s35
      %s29 = sphi 0, %s27
      %s30 = sphi 0, %s28
      %s31 = sphi 0, %s29
      %s32 = sphi 0, %s30
      %s42 = sphi 0, %s44
      %s45 = sphi 0, %s42
      %s46 = sphi 0, %s45
      %s62 = sphi 0, %s46
      %s66 = sphi 0, %s66
      %s68 = sphi 0, %s66
      %s69 = sphi 0, %s68
      %s83 = sphi 0, %s69
      %s87 = sphi 0, %s87
      %s89 = sphi 0, %s87
      %s90 = sphi 0, %s89
      %s104 = sphi 0, %s90
      %s110 = sphi 0, %s112
      %s113 = sphi 0, %s110
      %s114 = sphi 0, %s113
      %s130 = sphi 0, %s114
      %s134 = sphi 0, %s134
      %s136 = sphi 0, %s134
      %s137 = sphi 0, %s136
      %s151 = sphi 0, %s137
      %s155 = sphi 0, %s155
      %s157 = sphi 0, %s155
      %s158 = sphi 0, %s157
      %s172 = sphi 0, %s158
      %s178 = sphi 0, %s180
      %s181 = sphi 0, %s178
      %s182 = sphi 0, %s181
      %s198 = sphi 0, %s182
      %s202 = sphi 0, %s202
      %s204 = sphi 0, %s202
      %s205 = sphi 0, %s204
      %s219 = sphi 0, %s205
      %s223 = sphi 0, %s223
      %s225 = sphi 0, %s223
      %s226 = sphi 0, %s225
      %s240 = sphi 0, %s226
      %s246 = sphi 0, %s248
      %s249 = sphi 0, %s246
      %s250 = sphi 0, %s249
      %s266 = sphi 0, %s250
      %s270 = sphi 0, %s270
      %s272 = sphi 0, %s270
      %s273 = sphi 0, %s272
      %s287 = sphi 0, %s273
      %s291 = sphi 0, %s291
      %s293 = sphi 0, %s291
      %s294 = sphi 0, %s293
      %s308 = sphi 0, %s294
      %s314 = sphi 0, %s316
      %s317 = sphi 0, %s314
      %s318 = sphi 0, %s317
      %s334 = sphi 0, %s318
      %s340 = sphi 0, %s342
      %s343 = sphi 0, %s340
      %s344 = sphi 0, %s343
      %s360 = sphi 0, %s344
    $region4: #{dvcl_forward.3} parent=1 // loop_header_branch
      %23 = sbr.rel (%p21) target = $region8
    $region5: #{dvcl_forward.3} parent=1 // loop_body
      %s25 = ssub.s32 %s20, 1
      %s26 = ssub.s32 %s20, 2
      %s33 = sadd.s32 1, %s28
      %p34 = scmp.ge.s32.totalorder %s33, 4
      %s35 = scalar_select %p34, 0, %s33
      %s36 = sadd.s32 1, %s27
      %s37 = scalar_select %p34, %s36, %s27
      %p38 = scmp.ge.s32.totalorder %s37, 1
      %s39 = scalar_select %p38, 0, %s37
      %s40 = ssub.s32 %s27, %s39
      %p41 = scmp.eq.s32.totalorder %s40, 0
      %s43 = sadd.s32 %s42, 1
      %s44 = scalar_select %p41, %s42, %s43
      %p47 = pneg %p41
      %p48 = scmp.eq.s32.totalorder %s20, 3
      %p49 = por %p47, %p48
      %p50 = scmp.ne.s32.totalorder %s42, %s45
      %p51 = scmp.eq.s32.totalorder %s20, 0
      %p52 = por %p50, %p51
      %p53 = scmp.ne.s32.totalorder %s42, %s45
      %p54 = scmp.eq.s32.totalorder %s25, 3
      %p55 = por %p53, %p54
      %p56 = scmp.ne.s32.totalorder %s45, %s46
      %p57 = scmp.eq.s32.totalorder %s25, 0
      %p58 = por %p56, %p57
      %p59 = scmp.ne.s32.totalorder %s45, %s46
      %p60 = scmp.eq.s32.totalorder %s26, 3
      %p61 = por %p59, %p60
      %p63 = scmp.ne.s32.totalorder %s46, %s62
      %p64 = scmp.eq.s32.totalorder %s26, 0
      %p65 = por %p63, %p64
      %s67 = sadd.s32 %s66, 1
      %p70 = scmp.eq.s32.totalorder %s20, 3
      %p71 = scmp.ne.s32.totalorder %s66, %s68
      %p72 = scmp.eq.s32.totalorder %s20, 0
      %p73 = por %p71, %p72
      %p74 = scmp.ne.s32.totalorder %s66, %s68
      %p75 = scmp.eq.s32.totalorder %s25, 3
      %p76 = por %p74, %p75
      %p77 = scmp.ne.s32.totalorder %s68, %s69
      %p78 = scmp.eq.s32.totalorder %s25, 0
      %p79 = por %p77, %p78
      %p80 = scmp.ne.s32.totalorder %s68, %s69
      %p81 = scmp.eq.s32.totalorder %s26, 3
      %p82 = por %p80, %p81
      %p84 = scmp.ne.s32.totalorder %s69, %s83
      %p85 = scmp.eq.s32.totalorder %s26, 0
      %p86 = por %p84, %p85
      %s88 = sadd.s32 %s87, 1
      %p91 = scmp.eq.s32.totalorder %s20, 3
      %p92 = scmp.ne.s32.totalorder %s87, %s89
      %p93 = scmp.eq.s32.totalorder %s20, 0
      %p94 = por %p92, %p93
      %p95 = scmp.ne.s32.totalorder %s87, %s89
      %p96 = scmp.eq.s32.totalorder %s25, 3
      %p97 = por %p95, %p96
      %p98 = scmp.ne.s32.totalorder %s89, %s90
      %p99 = scmp.eq.s32.totalorder %s25, 0
      %p100 = por %p98, %p99
      %p101 = scmp.ne.s32.totalorder %s89, %s90
      %p102 = scmp.eq.s32.totalorder %s26, 3
      %p103 = por %p101, %p102
      %p105 = scmp.ne.s32.totalorder %s90, %s104
      %p106 = scmp.eq.s32.totalorder %s26, 0
      %p107 = por %p105, %p106
      %s108 = ssub.s32 %s28, %s35
      %p109 = scmp.eq.s32.totalorder %s108, 0
      %s111 = sadd.s32 %s110, 1
      %s112 = scalar_select %p109, %s110, %s111
      %p115 = pneg %p109
      %p116 = scmp.eq.s32.totalorder %s20, 3
      %p117 = por %p115, %p116
      %p118 = scmp.ne.s32.totalorder %s110, %s113
      %p119 = scmp.eq.s32.totalorder %s20, 0
      %p120 = por %p118, %p119
      %p121 = scmp.ne.s32.totalorder %s110, %s113
      %p122 = scmp.eq.s32.totalorder %s25, 3
      %p123 = por %p121, %p122
      %p124 = scmp.ne.s32.totalorder %s113, %s114
      %p125 = scmp.eq.s32.totalorder %s25, 0
      %p126 = por %p124, %p125
      %p127 = scmp.ne.s32.totalorder %s113, %s114
      %p128 = scmp.eq.s32.totalorder %s26, 3
      %p129 = por %p127, %p128
      %p131 = scmp.ne.s32.totalorder %s114, %s130
      %p132 = scmp.eq.s32.totalorder %s26, 0
      %p133 = por %p131, %p132
      %s135 = sadd.s32 %s134, 1
      %p138 = scmp.eq.s32.totalorder %s20, 3
      %p139 = scmp.ne.s32.totalorder %s134, %s136
      %p140 = scmp.eq.s32.totalorder %s20, 0
      %p141 = por %p139, %p140
      %p142 = scmp.ne.s32.totalorder %s134, %s136
      %p143 = scmp.eq.s32.totalorder %s25, 3
      %p144 = por %p142, %p143
      %p145 = scmp.ne.s32.totalorder %s136, %s137
      %p146 = scmp.eq.s32.totalorder %s25, 0
      %p147 = por %p145, %p146
      %p148 = scmp.ne.s32.totalorder %s136, %s137
      %p149 = scmp.eq.s32.totalorder %s26, 3
      %p150 = por %p148, %p149
      %p152 = scmp.ne.s32.totalorder %s137, %s151
      %p153 = scmp.eq.s32.totalorder %s26, 0
      %p154 = por %p152, %p153
      %s156 = sadd.s32 %s155, 1
      %p159 = scmp.eq.s32.totalorder %s20, 3
      %p160 = scmp.ne.s32.totalorder %s155, %s157
      %p161 = scmp.eq.s32.totalorder %s20, 0
      %p162 = por %p160, %p161
      %p163 = scmp.ne.s32.totalorder %s155, %s157
      %p164 = scmp.eq.s32.totalorder %s25, 3
      %p165 = por %p163, %p164
      %p166 = scmp.ne.s32.totalorder %s157, %s158
      %p167 = scmp.eq.s32.totalorder %s25, 0
      %p168 = por %p166, %p167
      %p169 = scmp.ne.s32.totalorder %s157, %s158
      %p170 = scmp.eq.s32.totalorder %s26, 3
      %p171 = por %p169, %p170
      %p173 = scmp.ne.s32.totalorder %s158, %s172
      %p174 = scmp.eq.s32.totalorder %s26, 0
      %p175 = por %p173, %p174
      %s176 = ssub.s32 %s28, %s35
      %p177 = scmp.eq.s32.totalorder %s176, 0
      %s179 = sadd.s32 %s178, 1
      %s180 = scalar_select %p177, %s178, %s179
      %p183 = pneg %p177
      %p184 = scmp.eq.s32.totalorder %s20, 3
      %p185 = por %p183, %p184
      %p186 = scmp.ne.s32.totalorder %s178, %s181
      %p187 = scmp.eq.s32.totalorder %s20, 0
      %p188 = por %p186, %p187
      %p189 = scmp.ne.s32.totalorder %s178, %s181
      %p190 = scmp.eq.s32.totalorder %s25, 3
      %p191 = por %p189, %p190
      %p192 = scmp.ne.s32.totalorder %s181, %s182
      %p193 = scmp.eq.s32.totalorder %s25, 0
      %p194 = por %p192, %p193
      %p195 = scmp.ne.s32.totalorder %s181, %s182
      %p196 = scmp.eq.s32.totalorder %s26, 3
      %p197 = por %p195, %p196
      %p199 = scmp.ne.s32.totalorder %s182, %s198
      %p200 = scmp.eq.s32.totalorder %s26, 0
      %p201 = por %p199, %p200
      %s203 = sadd.s32 %s202, 1
      %p206 = scmp.eq.s32.totalorder %s20, 3
      %p207 = scmp.ne.s32.totalorder %s202, %s204
      %p208 = scmp.eq.s32.totalorder %s20, 0
      %p209 = por %p207, %p208
      %p210 = scmp.ne.s32.totalorder %s202, %s204
      %p211 = scmp.eq.s32.totalorder %s25, 3
      %p212 = por %p210, %p211
      %p213 = scmp.ne.s32.totalorder %s204, %s205
      %p214 = scmp.eq.s32.totalorder %s25, 0
      %p215 = por %p213, %p214
      %p216 = scmp.ne.s32.totalorder %s204, %s205
      %p217 = scmp.eq.s32.totalorder %s26, 3
      %p218 = por %p216, %p217
      %p220 = scmp.ne.s32.totalorder %s205, %s219
      %p221 = scmp.eq.s32.totalorder %s26, 0
      %p222 = por %p220, %p221
      %s224 = sadd.s32 %s223, 1
      %p227 = scmp.eq.s32.totalorder %s20, 3
      %p228 = scmp.ne.s32.totalorder %s223, %s225
      %p229 = scmp.eq.s32.totalorder %s20, 0
      %p230 = por %p228, %p229
      %p231 = scmp.ne.s32.totalorder %s223, %s225
      %p232 = scmp.eq.s32.totalorder %s25, 3
      %p233 = por %p231, %p232
      %p234 = scmp.ne.s32.totalorder %s225, %s226
      %p235 = scmp.eq.s32.totalorder %s25, 0
      %p236 = por %p234, %p235
      %p237 = scmp.ne.s32.totalorder %s225, %s226
      %p238 = scmp.eq.s32.totalorder %s26, 3
      %p239 = por %p237, %p238
      %p241 = scmp.ne.s32.totalorder %s226, %s240
      %p242 = scmp.eq.s32.totalorder %s26, 0
      %p243 = por %p241, %p242
      %s244 = ssub.s32 %s28, %s35
      %p245 = scmp.eq.s32.totalorder %s244, 0
      %s247 = sadd.s32 %s246, 1
      %s248 = scalar_select %p245, %s246, %s247
      %p251 = pneg %p245
      %p252 = scmp.eq.s32.totalorder %s20, 3
      %p253 = por %p251, %p252
      %p254 = scmp.ne.s32.totalorder %s246, %s249
      %p255 = scmp.eq.s32.totalorder %s20, 0
      %p256 = por %p254, %p255
      %p257 = scmp.ne.s32.totalorder %s246, %s249
      %p258 = scmp.eq.s32.totalorder %s25, 3
      %p259 = por %p257, %p258
      %p260 = scmp.ne.s32.totalorder %s249, %s250
      %p261 = scmp.eq.s32.totalorder %s25, 0
      %p262 = por %p260, %p261
      %p263 = scmp.ne.s32.totalorder %s249, %s250
      %p264 = scmp.eq.s32.totalorder %s26, 3
      %p265 = por %p263, %p264
      %p267 = scmp.ne.s32.totalorder %s250, %s266
      %p268 = scmp.eq.s32.totalorder %s26, 0
      %p269 = por %p267, %p268
      %s271 = sadd.s32 %s270, 1
      %p274 = scmp.eq.s32.totalorder %s20, 3
      %p275 = scmp.ne.s32.totalorder %s270, %s272
      %p276 = scmp.eq.s32.totalorder %s20, 0
      %p277 = por %p275, %p276
      %p278 = scmp.ne.s32.totalorder %s270, %s272
      %p279 = scmp.eq.s32.totalorder %s25, 3
      %p280 = por %p278, %p279
      %p281 = scmp.ne.s32.totalorder %s272, %s273
      %p282 = scmp.eq.s32.totalorder %s25, 0
      %p283 = por %p281, %p282
      %p284 = scmp.ne.s32.totalorder %s272, %s273
      %p285 = scmp.eq.s32.totalorder %s26, 3
      %p286 = por %p284, %p285
      %p288 = scmp.ne.s32.totalorder %s273, %s287
      %p289 = scmp.eq.s32.totalorder %s26, 0
      %p290 = por %p288, %p289
      %s292 = sadd.s32 %s291, 1
      %p295 = scmp.eq.s32.totalorder %s20, 3
      %p296 = scmp.ne.s32.totalorder %s291, %s293
      %p297 = scmp.eq.s32.totalorder %s20, 0
      %p298 = por %p296, %p297
      %p299 = scmp.ne.s32.totalorder %s291, %s293
      %p300 = scmp.eq.s32.totalorder %s25, 3
      %p301 = por %p299, %p300
      %p302 = scmp.ne.s32.totalorder %s293, %s294
      %p303 = scmp.eq.s32.totalorder %s25, 0
      %p304 = por %p302, %p303
      %p305 = scmp.ne.s32.totalorder %s293, %s294
      %p306 = scmp.eq.s32.totalorder %s26, 3
      %p307 = por %p305, %p306
      %p309 = scmp.ne.s32.totalorder %s294, %s308
      %p310 = scmp.eq.s32.totalorder %s26, 0
      %p311 = por %p309, %p310
      %s312 = ssub.s32 %s28, %s35
      %p313 = scmp.eq.s32.totalorder %s312, 0
      %s315 = sadd.s32 %s314, 1
      %s316 = scalar_select %p313, %s314, %s315
      %p319 = pneg %p313
      %p320 = scmp.eq.s32.totalorder %s20, 3
      %p321 = por %p319, %p320
      %p322 = scmp.ne.s32.totalorder %s314, %s317
      %p323 = scmp.eq.s32.totalorder %s20, 0
      %p324 = por %p322, %p323
      %p325 = scmp.ne.s32.totalorder %s314, %s317
      %p326 = scmp.eq.s32.totalorder %s25, 3
      %p327 = por %p325, %p326
      %p328 = scmp.ne.s32.totalorder %s317, %s318
      %p329 = scmp.eq.s32.totalorder %s25, 0
      %p330 = por %p328, %p329
      %p331 = scmp.ne.s32.totalorder %s317, %s318
      %p332 = scmp.eq.s32.totalorder %s26, 3
      %p333 = por %p331, %p332
      %p335 = scmp.ne.s32.totalorder %s318, %s334
      %p336 = scmp.eq.s32.totalorder %s26, 0
      %p337 = por %p335, %p336
      %s338 = ssub.s32 %s27, %s39
      %p339 = scmp.eq.s32.totalorder %s338, 0
      %s341 = sadd.s32 %s340, 1
      %s342 = scalar_select %p339, %s340, %s341
      %p345 = pneg %p339
      %p346 = scmp.eq.s32.totalorder %s20, 3
      %p347 = por %p345, %p346
      %p348 = scmp.ne.s32.totalorder %s340, %s343
      %p349 = scmp.eq.s32.totalorder %s20, 0
      %p350 = por %p348, %p349
      %p351 = scmp.ne.s32.totalorder %s340, %s343
      %p352 = scmp.eq.s32.totalorder %s25, 3
      %p353 = por %p351, %p352
      %p354 = scmp.ne.s32.totalorder %s343, %s344
      %p355 = scmp.eq.s32.totalorder %s25, 0
      %p356 = por %p354, %p355
      %p357 = scmp.ne.s32.totalorder %s343, %s344
      %p358 = scmp.eq.s32.totalorder %s26, 3
      %p359 = por %p357, %p358
      %p361 = scmp.ne.s32.totalorder %s344, %s360
      %p362 = scmp.eq.s32.totalorder %s26, 0
      %p363 = por %p361, %p362
      %p364 = scmp.le.s32.totalorder 1, %s20
      %p365 = scmp.lt.s32.totalorder %s20, 5
      %p366 = pnand %p364, %p365
      %p367 = pneg %p366
      // Predicated region
      $region9: #{dvcl_forward.3} parent=5 // pred_check
        _
      $region10: #{dvcl_forward.3} parent=5 // pred_check_branch
        %369 = sbr.rel (%p366) target = $region12
      $region11: #{dvcl_forward.3} parent=5 // pred_region
        %s370 = ssub.s32 %s20, 1
        // Predicated region
        $region13: #{dvcl_forward.3} parent=11 // pred_check
          %p371 = pneg %p58
        $region14: #{dvcl_forward.3} parent=11 // pred_check_branch
          %373 = sbr.rel (%p371) target = $region16
        $region15: #{dvcl_forward.3} parent=11 // pred_region
          %p374 = scmp.lt.s32.totalorder %s29, 0
          %s375 = scalar_select %p374, %s29, 0
          %s376 = smul.addr %s375, 8
          %s377 = scalar_lea.vmem %s0, %s376
        $region16: #{dvcl_forward.3} parent=11 // pred_fallthru
          _
        // Predicated region
        $region17: #{dvcl_forward.3} parent=11 // pred_check
          %p378 = pneg %p79
        $region18: #{dvcl_forward.3} parent=11 // pred_check_branch
          %380 = sbr.rel (%p378) target = $region20
        $region19: #{dvcl_forward.3} parent=11 // pred_region
          _
        $region20: #{dvcl_forward.3} parent=11 // pred_fallthru
          _
        // Predicated region
        $region21: #{dvcl_forward.3} parent=11 // pred_check
          %p381 = pneg %p100
        $region22: #{dvcl_forward.3} parent=11 // pred_check_branch
          %383 = sbr.rel (%p381) target = $region24
        $region23: #{dvcl_forward.3} parent=11 // pred_region
          _
        $region24: #{dvcl_forward.3} parent=11 // pred_fallthru
          _
        // Predicated region
        $region25: #{dvcl_forward.3} parent=11 // pred_check
          %p384 = pneg %p147
        $region26: #{dvcl_forward.3} parent=11 // pred_check_branch
          %386 = sbr.rel (%p384) target = $region28
        $region27: #{dvcl_forward.3} parent=11 // pred_region
          _
        $region28: #{dvcl_forward.3} parent=11 // pred_fallthru
          _
        // Predicated region
        $region29: #{dvcl_forward.3} parent=11 // pred_check
          %p387 = pneg %p168
        $region30: #{dvcl_forward.3} parent=11 // pred_check_branch
          %389 = sbr.rel (%p387) target = $region32
        $region31: #{dvcl_forward.3} parent=11 // pred_region
          _
        $region32: #{dvcl_forward.3} parent=11 // pred_fallthru
          _
        // Predicated region
        $region33: #{dvcl_forward.3} parent=11 // pred_check
          %p390 = pneg %p215
        $region34: #{dvcl_forward.3} parent=11 // pred_check_branch
          %392 = sbr.rel (%p390) target = $region36
        $region35: #{dvcl_forward.3} parent=11 // pred_region
          _
        $region36: #{dvcl_forward.3} parent=11 // pred_fallthru
          _
        // Predicated region
        $region37: #{dvcl_forward.3} parent=11 // pred_check
          %p393 = pneg %p236
        $region38: #{dvcl_forward.3} parent=11 // pred_check_branch
          %395 = sbr.rel (%p393) target = $region40
        $region39: #{dvcl_forward.3} parent=11 // pred_region
          _
        $region40: #{dvcl_forward.3} parent=11 // pred_fallthru
          _
        // Predicated region
        $region41: #{dvcl_forward.3} parent=11 // pred_check
          %p396 = pneg %p283
        $region42: #{dvcl_forward.3} parent=11 // pred_check_branch
          %398 = sbr.rel (%p396) target = $region44
        $region43: #{dvcl_forward.3} parent=11 // pred_region
          _
        $region44: #{dvcl_forward.3} parent=11 // pred_fallthru
          _
        // Predicated region
        $region45: #{dvcl_forward.3} parent=11 // pred_check
          %p399 = pneg %p304
        $region46: #{dvcl_forward.3} parent=11 // pred_check_branch
          %401 = sbr.rel (%p399) target = $region48
        $region47: #{dvcl_forward.3} parent=11 // pred_region
          _
        $region48: #{dvcl_forward.3} parent=11 // pred_fallthru
          _
      $region12: #{dvcl_forward.3} parent=5 // pred_fallthru
        _
      %p402 = scmp.lt.s32.totalorder %s20, 4
      // Predicated region
      $region49: #{dvcl_forward.3} parent=5 // pred_check
        %p403 = pneg %p402
      $region50: #{dvcl_forward.3} parent=5 // pred_check_branch
        %405 = sbr.rel (%p403) target = $region52
      $region51: #{dvcl_forward.3} parent=5 // pred_region
        // Predicated region
        $region53: #{dvcl_forward.3} parent=51 // pred_check
          %p406 = pneg %p120
        $region54: #{dvcl_forward.3} parent=51 // pred_check_branch
          %408 = sbr.rel (%p406) target = $region56
        $region55: #{dvcl_forward.3} parent=51 // pred_region
          %p409 = scmp.lt.s32.totalorder %s28, 3
          %s410 = scalar_select %p409, %s28, 3
          %s411 = smul.addr %s410, 16
          %s412 = smul.addr %s411, 8
          %s413 = scalar_lea.vmem %s3, %s412
        $region56: #{dvcl_forward.3} parent=51 // pred_fallthru
          _
        // Predicated region
        $region57: #{dvcl_forward.3} parent=51 // pred_check
          %p414 = pneg %p188
        $region58: #{dvcl_forward.3} parent=51 // pred_check_branch
          %416 = sbr.rel (%p414) target = $region60
        $region59: #{dvcl_forward.3} parent=51 // pred_region
          %p417 = scmp.lt.s32.totalorder %s28, 3
          %s418 = scalar_select %p417, %s28, 3
          %s419 = smul.addr %s418, 16
          %s420 = smul.addr %s419, 8
          %s421 = scalar_lea.vmem %s6, %s420
        $region60: #{dvcl_forward.3} parent=51 // pred_fallthru
          _
        // Predicated region
        $region61: #{dvcl_forward.3} parent=51 // pred_check
          %p422 = pneg %p256
        $region62: #{dvcl_forward.3} parent=51 // pred_check_branch
          %424 = sbr.rel (%p422) target = $region64
        $region63: #{dvcl_forward.3} parent=51 // pred_region
          %p425 = scmp.lt.s32.totalorder %s28, 3
          %s426 = scalar_select %p425, %s28, 3
          %s427 = smul.addr %s426, 16
          %s428 = smul.addr %s427, 8
          %s429 = scalar_lea.vmem %s9, %s428
        $region64: #{dvcl_forward.3} parent=51 // pred_fallthru
          _
        // Predicated region
        $region65: #{dvcl_forward.3} parent=51 // pred_check
          %p430 = pneg %p324
        $region66: #{dvcl_forward.3} parent=51 // pred_check_branch
          %432 = sbr.rel (%p430) target = $region68
        $region67: #{dvcl_forward.3} parent=51 // pred_region
          %p433 = scmp.lt.s32.totalorder %s28, 3
          %s434 = scalar_select %p433, %s28, 3
          %s435 = smul.addr %s434, 4
          %s436 = scalar_lea.vmem %s12, %s435
        $region68: #{dvcl_forward.3} parent=51 // pred_fallthru
          _
      $region52: #{dvcl_forward.3} parent=5 // pred_fallthru
        _
      %p437 = scmp.le.s32.totalorder 1, %s20
      %p438 = scmp.lt.s32.totalorder %s20, 5
      %p439 = pnand %p437, %p438
      %p440 = pneg %p439
      // Predicated region
      $region69: #{dvcl_forward.3} parent=5 // pred_check
        _
      $region70: #{dvcl_forward.3} parent=5 // pred_check_branch
        %442 = sbr.rel (%p439) target = $region72
      $region71: #{dvcl_forward.3} parent=5 // pred_region
        %s443 = ssub.s32 %s20, 1
        %p444 = scmp.lt.s32.totalorder %s29, 0
        %s445 = scalar_select %p444, %s29, 0
        %s446 = smul.addr %s445, 8
        %s447 = scalar_lea.vmem %s0, %s446
        %p448 = pneg %p58
        %p449 = pneg %p55
        %p450 = pneg %p79
        %p451 = pneg %p76
        %p452 = pneg %p100
        %p453 = pneg %p97
        %p454 = scmp.lt.s32.totalorder %s30, 3
        %s455 = scalar_select %p454, %s30, 3
        %s456 = smul.addr %s455, 16
        %s457 = smul.addr %s456, 8
        %s458 = scalar_lea.vmem %s3, %s457
        %p459 = pneg %p126
        %p460 = pneg %p123
        %p461 = pneg %p147
        %p462 = pneg %p144
        %p463 = pneg %p168
        %p464 = pneg %p165
        %p465 = scmp.lt.s32.totalorder %s30, 3
        %s466 = scalar_select %p465, %s30, 3
        %s467 = smul.addr %s466, 16
        %s468 = smul.addr %s467, 8
        %s469 = scalar_lea.vmem %s6, %s468
        %p470 = pneg %p194
        %p471 = pneg %p191
        %p472 = pneg %p215
        %p473 = pneg %p212
        %p474 = pneg %p236
        %p475 = pneg %p233
        %p476 = scmp.lt.s32.totalorder %s30, 3
        %s477 = scalar_select %p476, %s30, 3
        %s478 = smul.addr %s477, 16
        %s479 = smul.addr %s478, 8
        %s480 = scalar_lea.vmem %s9, %s479
        %p481 = pneg %p262
        %p482 = pneg %p259
        %p483 = pneg %p283
        %p484 = pneg %p280
        %p485 = pneg %p304
        %p486 = pneg %p301
        %p487 = scmp.lt.s32.totalorder %s30, 3
        %s488 = scalar_select %p487, %s30, 3
        %s489 = smul.addr %s488, 4
        %s490 = scalar_lea.vmem %s12, %s489
        %p491 = pneg %p330
        %p492 = pneg %p327
        %p493 = pneg %p356
        %p494 = pneg %p353
        %p495 = scmp.lt.s32.totalorder %s29, 0
        %s496 = scalar_select %p495, %s29, 0
        %s497 = smul.addr %s496, 8
        %s498 = scalar_lea.vmem %s0, %s497
        %p499 = scmp.lt.s32.totalorder %s30, 3
        %s500 = scalar_select %p499, %s30, 3
        %s501 = smul.addr %s500, 16
        %s502 = smul.addr %s501, 8
        %s503 = scalar_lea.vmem %s3, %s502
        %p504 = scmp.lt.s32.totalorder %s30, 3
        %s505 = scalar_select %p504, %s30, 3
        %s506 = smul.addr %s505, 16
        %s507 = smul.addr %s506, 8
        %s508 = scalar_lea.vmem %s6, %s507
        %p509 = scmp.lt.s32.totalorder %s30, 3
        %s510 = scalar_select %p509, %s30, 3
        %s511 = smul.addr %s510, 16
        %s512 = smul.addr %s511, 8
        %s513 = scalar_lea.vmem %s9, %s512
        %p514 = scmp.lt.s32.totalorder %s30, 3
        %s515 = scalar_select %p514, %s30, 3
        %s516 = smul.addr %s515, 4
        %s517 = scalar_lea.vmem %s12, %s516
        %v518 = vld [vmem:[%s498] sm:$0xff]
        %v519 = vld [vmem:[%s1] sm:$0xff]
        %v520 = vld [vmem:[%s1 + $0x8] sm:$0xff]
        %v521 = vld [vmem:[%s1 + $0x10] sm:$0xff]
        %v522 = vld [vmem:[%s1 + $0x18] sm:$0xff]
        %v523 = vld [vmem:[%s1 + $0x20] sm:$0xff]
        %v524 = vld [vmem:[%s1 + $0x28] sm:$0xff]
        %v525 = vld [vmem:[%s1 + $0x30] sm:$0xff]
        %v526 = vld [vmem:[%s1 + $0x38] sm:$0xff]
        %v527 = vld [vmem:[%s1 + $0x40] sm:$0xff]
        %v528 = vld [vmem:[%s1 + $0x48] sm:$0xff]
        %v529 = vld [vmem:[%s1 + $0x50] sm:$0xff]
        %v530 = vld [vmem:[%s1 + $0x58] sm:$0xff]
        %v531 = vld [vmem:[%s1 + $0x60] sm:$0xff]
        %v532 = vld [vmem:[%s1 + $0x68] sm:$0xff]
        %v533 = vld [vmem:[%s1 + $0x70] sm:$0xff]
        %v534 = vld [vmem:[%s1 + $0x78] sm:$0xff]
        %v535 = vld [vmem:[%s2] sm:$0xff]
        %v536 = vld [vmem:[%s2 + $0x8] sm:$0xff]
        %v537 = vld [vmem:[%s2 + $0x10] sm:$0xff]
        %v538 = vld [vmem:[%s2 + $0x18] sm:$0xff]
        %v539 = vld [vmem:[%s2 + $0x20] sm:$0xff]
        %v540 = vld [vmem:[%s2 + $0x28] sm:$0xff]
        %v541 = vld [vmem:[%s2 + $0x30] sm:$0xff]
        %v542 = vld [vmem:[%s2 + $0x38] sm:$0xff]
        %v543 = vld [vmem:[%s2 + $0x40] sm:$0xff]
        %v544 = vld [vmem:[%s2 + $0x48] sm:$0xff]
        %v545 = vld [vmem:[%s2 + $0x50] sm:$0xff]
        %v546 = vld [vmem:[%s2 + $0x58] sm:$0xff]
        %v547 = vld [vmem:[%s2 + $0x60] sm:$0xff]
        %v548 = vld [vmem:[%s2 + $0x68] sm:$0xff]
        %v549 = vld [vmem:[%s2 + $0x70] sm:$0xff]
        %v550 = vld [vmem:[%s2 + $0x78] sm:$0xff]
        %v551 = vld [vmem:[%s503] sm:$0xff]
        %v552 = vld [vmem:[%s503 + $0x8] sm:$0xff]
        %v553 = vld [vmem:[%s503 + $0x10] sm:$0xff]
        %v554 = vld [vmem:[%s503 + $0x18] sm:$0xff]
        %v555 = vld [vmem:[%s503 + $0x20] sm:$0xff]
        %v556 = vld [vmem:[%s503 + $0x28] sm:$0xff]
        %v557 = vld [vmem:[%s503 + $0x30] sm:$0xff]
        %v558 = vld [vmem:[%s503 + $0x38] sm:$0xff]
        %v559 = vld [vmem:[%s503 + $0x40] sm:$0xff]
        %v560 = vld [vmem:[%s503 + $0x48] sm:$0xff]
        %v561 = vld [vmem:[%s503 + $0x50] sm:$0xff]
        %v562 = vld [vmem:[%s503 + $0x58] sm:$0xff]
        %v563 = vld [vmem:[%s503 + $0x60] sm:$0xff]
        %v564 = vld [vmem:[%s503 + $0x68] sm:$0xff]
        %v565 = vld [vmem:[%s503 + $0x70] sm:$0xff]
        %v566 = vld [vmem:[%s503 + $0x78] sm:$0xff]
        %v567 = vmul.f32 %v535, 0.5
        %v568 = vmul.f32 %v536, 0.5
        %v569 = vmul.f32 %v537, 0.5
        %v570 = vmul.f32 %v538, 0.5
        %v571 = vmul.f32 %v539, 0.5
        %v572 = vmul.f32 %v540, 0.5
        %v573 = vmul.f32 %v541, 0.5
        %v574 = vmul.f32 %v542, 0.5
        %v575 = vmul.f32 %v543, 0.5
        %v576 = vmul.f32 %v544, 0.5
        %v577 = vmul.f32 %v545, 0.5
        %v578 = vmul.f32 %v546, 0.5
        %v579 = vmul.f32 %v547, 0.5
        %v580 = vmul.f32 %v548, 0.5
        %v581 = vmul.f32 %v549, 0.5
        %v582 = vmul.f32 %v550, 0.5
        %v583 = vmul.f32 %v567, 1.442695
        %v584 = vpow.pop %v583
        %v585 = vmul.f32 %v568, 1.442695
        %v586 = vpow.pop %v585
        %v587 = vmul.f32 %v569, 1.442695
        %v588 = vpow.pop %v587
        %v589 = vmul.f32 %v570, 1.442695
        %v590 = vpow.pop %v589
        %v591 = vmul.f32 %v571, 1.442695
        %v592 = vpow.pop %v591
        %v593 = vmul.f32 %v572, 1.442695
        %v594 = vpow.pop %v593
        %v595 = vmul.f32 %v573, 1.442695
        %v596 = vpow.pop %v595
        %v597 = vmul.f32 %v574, 1.442695
        %v598 = vpow.pop %v597
        %v599 = vmul.f32 %v575, 1.442695
        %v600 = vpow.pop %v599
        %v601 = vmul.f32 %v576, 1.442695
        %v602 = vpow.pop %v601
        %v603 = vmul.f32 %v577, 1.442695
        %v604 = vpow.pop %v603
        %v605 = vmul.f32 %v578, 1.442695
        %v606 = vpow.pop %v605
        %v607 = vmul.f32 %v579, 1.442695
        %v608 = vpow.pop %v607
        %v609 = vmul.f32 %v580, 1.442695
        %v610 = vpow.pop %v609
        %v611 = vmul.f32 %v581, 1.442695
        %v612 = vpow.pop %v611
        %v613 = vmul.f32 %v582, 1.442695
        %v614 = vpow.pop %v613
        %v615 = vmul.f32 %v551, %v584
        %v616 = vmul.f32 %v552, %v586
        %v617 = vmul.f32 %v553, %v588
        %v618 = vmul.f32 %v554, %v590
        %v619 = vmul.f32 %v555, %v592
        %v620 = vmul.f32 %v556, %v594
        %v621 = vmul.f32 %v557, %v596
        %v622 = vmul.f32 %v558, %v598
        %v623 = vmul.f32 %v559, %v600
        %v624 = vmul.f32 %v560, %v602
        %v625 = vmul.f32 %v561, %v604
        %v626 = vmul.f32 %v562, %v606
        %v627 = vmul.f32 %v563, %v608
        %v628 = vmul.f32 %v564, %v610
        %v629 = vmul.f32 %v565, %v612
        %v630 = vmul.f32 %v566, %v614
        %v631 = vadd.f32 %v519, %v615
        %v632 = vadd.f32 %v520, %v616
        %v633 = vadd.f32 %v521, %v617
        %v634 = vadd.f32 %v522, %v618
        %v635 = vadd.f32 %v523, %v619
        %v636 = vadd.f32 %v524, %v620
        %v637 = vadd.f32 %v525, %v621
        %v638 = vadd.f32 %v526, %v622
        %v639 = vadd.f32 %v527, %v623
        %v640 = vadd.f32 %v528, %v624
        %v641 = vadd.f32 %v529, %v625
        %v642 = vadd.f32 %v530, %v626
        %v643 = vadd.f32 %v531, %v627
        %v644 = vadd.f32 %v532, %v628
        %v645 = vadd.f32 %v533, %v629
        %v646 = vadd.f32 %v534, %v630
        %v647 = vld [vmem:[%s10] sm:$0x1]
        %v648 = vld [vmem:[%s517] sm:$0x1]
        %v649 = vld [vmem:[%s11] sm:$0x1]
        %v650 = vmul.f32 %v649, 0.5
        %v651 = vmul.f32 %v650, 1.442695
        %v652 = vpow.pop %v651
        %v653 = vmul.f32 %v648, %v652
        %v654 = vadd.f32 %v647, %v653
        %v655 = vpack.c.bf16 %v518, %v518
        %v656 = vpack.c.bf16 %v632, %v631
        %v657 = vpack.c.bf16 %v634, %v633
        %v658 = vpack.c.bf16 %v636, %v635
        %v659 = vpack.c.bf16 %v638, %v637
        %v660 = vpack.c.bf16 %v640, %v639
        %v661 = vpack.c.bf16 %v642, %v641
        %v662 = vpack.c.bf16 %v644, %v643
        %v663 = vpack.c.bf16 %v646, %v645
        %v664 = vperm.slane %v654, 0
        %665 = vmatpush.bf16.msra.mxu0 %v663
        %666 = vmatpush.bf16.msra.mxu0 %v662
        %667 = vmatpush.bf16.msra.mxu0 %v661
        %668 = vmatpush.bf16.msra.mxu0 %v660
        %669 = vmatpush.bf16.msra.mxu0 %v659
        %670 = vmatpush.bf16.msra.mxu0 %v658
        %671 = vmatpush.bf16.msra.mxu0 %v657
        %672 = vmatpush.bf16.msra.mxu0 %v656
        %673 = vmatmul.bf16.gmra.mxu0 %v655
        %v674 = vpop.f32.mrf.mxu0
        %v675 = vadd.f32 %v664, %v674
        %v676 = vpop.f32.mrf.mxu0
        %677 = vdwg.mxu0
        %v678 = vmax.f32 %v675, 0.0
        %v679 = vld [vmem:[%s4] sm:$0xff]
        %v680 = vld [vmem:[%s4 + $0x8] sm:$0xff]
        %v681 = vld [vmem:[%s4 + $0x10] sm:$0xff]
        %v682 = vld [vmem:[%s4 + $0x18] sm:$0xff]
        %v683 = vld [vmem:[%s4 + $0x20] sm:$0xff]
        %v684 = vld [vmem:[%s4 + $0x28] sm:$0xff]
        %v685 = vld [vmem:[%s4 + $0x30] sm:$0xff]
        %v686 = vld [vmem:[%s4 + $0x38] sm:$0xff]
        %v687 = vld [vmem:[%s4 + $0x40] sm:$0xff]
        %v688 = vld [vmem:[%s4 + $0x48] sm:$0xff]
        %v689 = vld [vmem:[%s4 + $0x50] sm:$0xff]
        %v690 = vld [vmem:[%s4 + $0x58] sm:$0xff]
        %v691 = vld [vmem:[%s4 + $0x60] sm:$0xff]
        %v692 = vld [vmem:[%s4 + $0x68] sm:$0xff]
        %v693 = vld [vmem:[%s4 + $0x70] sm:$0xff]
        %v694 = vld [vmem:[%s4 + $0x78] sm:$0xff]
        %v695 = vld [vmem:[%s5] sm:$0xff]
        %v696 = vld [vmem:[%s5 + $0x8] sm:$0xff]
        %v697 = vld [vmem:[%s5 + $0x10] sm:$0xff]
        %v698 = vld [vmem:[%s5 + $0x18] sm:$0xff]
        %v699 = vld [vmem:[%s5 + $0x20] sm:$0xff]
        %v700 = vld [vmem:[%s5 + $0x28] sm:$0xff]
        %v701 = vld [vmem:[%s5 + $0x30] sm:$0xff]
        %v702 = vld [vmem:[%s5 + $0x38] sm:$0xff]
        %v703 = vld [vmem:[%s5 + $0x40] sm:$0xff]
        %v704 = vld [vmem:[%s5 + $0x48] sm:$0xff]
        %v705 = vld [vmem:[%s5 + $0x50] sm:$0xff]
        %v706 = vld [vmem:[%s5 + $0x58] sm:$0xff]
        %v707 = vld [vmem:[%s5 + $0x60] sm:$0xff]
        %v708 = vld [vmem:[%s5 + $0x68] sm:$0xff]
        %v709 = vld [vmem:[%s5 + $0x70] sm:$0xff]
        %v710 = vld [vmem:[%s5 + $0x78] sm:$0xff]
        %v711 = vld [vmem:[%s508] sm:$0xff]
        %v712 = vld [vmem:[%s508 + $0x8] sm:$0xff]
        %v713 = vld [vmem:[%s508 + $0x10] sm:$0xff]
        %v714 = vld [vmem:[%s508 + $0x18] sm:$0xff]
        %v715 = vld [vmem:[%s508 + $0x20] sm:$0xff]
        %v716 = vld [vmem:[%s508 + $0x28] sm:$0xff]
        %v717 = vld [vmem:[%s508 + $0x30] sm:$0xff]
        %v718 = vld [vmem:[%s508 + $0x38] sm:$0xff]
        %v719 = vld [vmem:[%s508 + $0x40] sm:$0xff]
        %v720 = vld [vmem:[%s508 + $0x48] sm:$0xff]
        %v721 = vld [vmem:[%s508 + $0x50] sm:$0xff]
        %v722 = vld [vmem:[%s508 + $0x58] sm:$0xff]
        %v723 = vld [vmem:[%s508 + $0x60] sm:$0xff]
        %v724 = vld [vmem:[%s508 + $0x68] sm:$0xff]
        %v725 = vld [vmem:[%s508 + $0x70] sm:$0xff]
        %v726 = vld [vmem:[%s508 + $0x78] sm:$0xff]
        %v727 = vmul.f32 %v695, 0.5
        %v728 = vmul.f32 %v696, 0.5
        %v729 = vmul.f32 %v697, 0.5
        %v730 = vmul.f32 %v698, 0.5
        %v731 = vmul.f32 %v699, 0.5
        %v732 = vmul.f32 %v700, 0.5
        %v733 = vmul.f32 %v701, 0.5
        %v734 = vmul.f32 %v702, 0.5
        %v735 = vmul.f32 %v703, 0.5
        %v736 = vmul.f32 %v704, 0.5
        %v737 = vmul.f32 %v705, 0.5
        %v738 = vmul.f32 %v706, 0.5
        %v739 = vmul.f32 %v707, 0.5
        %v740 = vmul.f32 %v708, 0.5
        %v741 = vmul.f32 %v709, 0.5
        %v742 = vmul.f32 %v710, 0.5
        %v743 = vmul.f32 %v727, 1.442695
        %v744 = vpow.pop %v743
        %v745 = vmul.f32 %v728, 1.442695
        %v746 = vpow.pop %v745
        %v747 = vmul.f32 %v729, 1.442695
        %v748 = vpow.pop %v747
        %v749 = vmul.f32 %v730, 1.442695
        %v750 = vpow.pop %v749
        %v751 = vmul.f32 %v731, 1.442695
        %v752 = vpow.pop %v751
        %v753 = vmul.f32 %v732, 1.442695
        %v754 = vpow.pop %v753
        %v755 = vmul.f32 %v733, 1.442695
        %v756 = vpow.pop %v755
        %v757 = vmul.f32 %v734, 1.442695
        %v758 = vpow.pop %v757
        %v759 = vmul.f32 %v735, 1.442695
        %v760 = vpow.pop %v759
        %v761 = vmul.f32 %v736, 1.442695
        %v762 = vpow.pop %v761
        %v763 = vmul.f32 %v737, 1.442695
        %v764 = vpow.pop %v763
        %v765 = vmul.f32 %v738, 1.442695
        %v766 = vpow.pop %v765
        %v767 = vmul.f32 %v739, 1.442695
        %v768 = vpow.pop %v767
        %v769 = vmul.f32 %v740, 1.442695
        %v770 = vpow.pop %v769
        %v771 = vmul.f32 %v741, 1.442695
        %v772 = vpow.pop %v771
        %v773 = vmul.f32 %v742, 1.442695
        %v774 = vpow.pop %v773
        %v775 = vmul.f32 %v711, %v744
        %v776 = vmul.f32 %v712, %v746
        %v777 = vmul.f32 %v713, %v748
        %v778 = vmul.f32 %v714, %v750
        %v779 = vmul.f32 %v715, %v752
        %v780 = vmul.f32 %v716, %v754
        %v781 = vmul.f32 %v717, %v756
        %v782 = vmul.f32 %v718, %v758
        %v783 = vmul.f32 %v719, %v760
        %v784 = vmul.f32 %v720, %v762
        %v785 = vmul.f32 %v721, %v764
        %v786 = vmul.f32 %v722, %v766
        %v787 = vmul.f32 %v723, %v768
        %v788 = vmul.f32 %v724, %v770
        %v789 = vmul.f32 %v725, %v772
        %v790 = vmul.f32 %v726, %v774
        %v791 = vadd.f32 %v679, %v775
        %v792 = vadd.f32 %v680, %v776
        %v793 = vadd.f32 %v681, %v777
        %v794 = vadd.f32 %v682, %v778
        %v795 = vadd.f32 %v683, %v779
        %v796 = vadd.f32 %v684, %v780
        %v797 = vadd.f32 %v685, %v781
        %v798 = vadd.f32 %v686, %v782
        %v799 = vadd.f32 %v687, %v783
        %v800 = vadd.f32 %v688, %v784
        %v801 = vadd.f32 %v689, %v785
        %v802 = vadd.f32 %v690, %v786
        %v803 = vadd.f32 %v691, %v787
        %v804 = vadd.f32 %v692, %v788
        %v805 = vadd.f32 %v693, %v789
        %v806 = vadd.f32 %v694, %v790
        %v807 = vld [vmem:[%s10 + $0x1] sm:$0x1]
        %v808 = vld [vmem:[%s517 + $0x1] sm:$0x1]
        %v809 = vld [vmem:[%s11 + $0x1] sm:$0x1]
        %v810 = vmul.f32 %v809, 0.5
        %v811 = vmul.f32 %v810, 1.442695
        %v812 = vpow.pop %v811
        %v813 = vmul.f32 %v808, %v812
        %v814 = vadd.f32 %v807, %v813
        %v815 = vpack.c.bf16 %v678, %v678
        %v816 = vpack.c.bf16 %v792, %v791
        %v817 = vpack.c.bf16 %v794, %v793
        %v818 = vpack.c.bf16 %v796, %v795
        %v819 = vpack.c.bf16 %v798, %v797
        %v820 = vpack.c.bf16 %v800, %v799
        %v821 = vpack.c.bf16 %v802, %v801
        %v822 = vpack.c.bf16 %v804, %v803
        %v823 = vpack.c.bf16 %v806, %v805
        %v824 = vperm.slane %v814, 0
        %825 = vmatpush.bf16.msra.mxu0 %v823
        %826 = vmatpush.bf16.msra.mxu0 %v822
        %827 = vmatpush.bf16.msra.mxu0 %v821
        %828 = vmatpush.bf16.msra.mxu0 %v820
        %829 = vmatpush.bf16.msra.mxu0 %v819
        %830 = vmatpush.bf16.msra.mxu0 %v818
        %831 = vmatpush.bf16.msra.mxu0 %v817
        %832 = vmatpush.bf16.msra.mxu0 %v816
        %833 = vmatmul.bf16.gmra.mxu0 %v815
        %v834 = vpop.f32.mrf.mxu0
        %v835 = vadd.f32 %v824, %v834
        %v836 = vpop.f32.mrf.mxu0
        %837 = vdwg.mxu0
        %v838 = vmax.f32 %v835, 0.0
        %v839 = vld [vmem:[%s7] sm:$0xff]
        %v840 = vld [vmem:[%s7 + $0x8] sm:$0xff]
        %v841 = vld [vmem:[%s7 + $0x10] sm:$0xff]
        %v842 = vld [vmem:[%s7 + $0x18] sm:$0xff]
        %v843 = vld [vmem:[%s7 + $0x20] sm:$0xff]
        %v844 = vld [vmem:[%s7 + $0x28] sm:$0xff]
        %v845 = vld [vmem:[%s7 + $0x30] sm:$0xff]
        %v846 = vld [vmem:[%s7 + $0x38] sm:$0xff]
        %v847 = vld [vmem:[%s7 + $0x40] sm:$0xff]
        %v848 = vld [vmem:[%s7 + $0x48] sm:$0xff]
        %v849 = vld [vmem:[%s7 + $0x50] sm:$0xff]
        %v850 = vld [vmem:[%s7 + $0x58] sm:$0xff]
        %v851 = vld [vmem:[%s7 + $0x60] sm:$0xff]
        %v852 = vld [vmem:[%s7 + $0x68] sm:$0xff]
        %v853 = vld [vmem:[%s7 + $0x70] sm:$0xff]
        %v854 = vld [vmem:[%s7 + $0x78] sm:$0xff]
        %v855 = vld [vmem:[%s8] sm:$0xff]
        %v856 = vld [vmem:[%s8 + $0x8] sm:$0xff]
        %v857 = vld [vmem:[%s8 + $0x10] sm:$0xff]
        %v858 = vld [vmem:[%s8 + $0x18] sm:$0xff]
        %v859 = vld [vmem:[%s8 + $0x20] sm:$0xff]
        %v860 = vld [vmem:[%s8 + $0x28] sm:$0xff]
        %v861 = vld [vmem:[%s8 + $0x30] sm:$0xff]
        %v862 = vld [vmem:[%s8 + $0x38] sm:$0xff]
        %v863 = vld [vmem:[%s8 + $0x40] sm:$0xff]
        %v864 = vld [vmem:[%s8 + $0x48] sm:$0xff]
        %v865 = vld [vmem:[%s8 + $0x50] sm:$0xff]
        %v866 = vld [vmem:[%s8 + $0x58] sm:$0xff]
        %v867 = vld [vmem:[%s8 + $0x60] sm:$0xff]
        %v868 = vld [vmem:[%s8 + $0x68] sm:$0xff]
        %v869 = vld [vmem:[%s8 + $0x70] sm:$0xff]
        %v870 = vld [vmem:[%s8 + $0x78] sm:$0xff]
        %v871 = vld [vmem:[%s513] sm:$0xff]
        %v872 = vld [vmem:[%s513 + $0x8] sm:$0xff]
        %v873 = vld [vmem:[%s513 + $0x10] sm:$0xff]
        %v874 = vld [vmem:[%s513 + $0x18] sm:$0xff]
        %v875 = vld [vmem:[%s513 + $0x20] sm:$0xff]
        %v876 = vld [vmem:[%s513 + $0x28] sm:$0xff]
        %v877 = vld [vmem:[%s513 + $0x30] sm:$0xff]
        %v878 = vld [vmem:[%s513 + $0x38] sm:$0xff]
        %v879 = vld [vmem:[%s513 + $0x40] sm:$0xff]
        %v880 = vld [vmem:[%s513 + $0x48] sm:$0xff]
        %v881 = vld [vmem:[%s513 + $0x50] sm:$0xff]
        %v882 = vld [vmem:[%s513 + $0x58] sm:$0xff]
        %v883 = vld [vmem:[%s513 + $0x60] sm:$0xff]
        %v884 = vld [vmem:[%s513 + $0x68] sm:$0xff]
        %v885 = vld [vmem:[%s513 + $0x70] sm:$0xff]
        %v886 = vld [vmem:[%s513 + $0x78] sm:$0xff]
        %v887 = vmul.f32 %v855, 0.5
        %v888 = vmul.f32 %v856, 0.5
        %v889 = vmul.f32 %v857, 0.5
        %v890 = vmul.f32 %v858, 0.5
        %v891 = vmul.f32 %v859, 0.5
        %v892 = vmul.f32 %v860, 0.5
        %v893 = vmul.f32 %v861, 0.5
        %v894 = vmul.f32 %v862, 0.5
        %v895 = vmul.f32 %v863, 0.5
        %v896 = vmul.f32 %v864, 0.5
        %v897 = vmul.f32 %v865, 0.5
        %v898 = vmul.f32 %v866, 0.5
        %v899 = vmul.f32 %v867, 0.5
        %v900 = vmul.f32 %v868, 0.5
        %v901 = vmul.f32 %v869, 0.5
        %v902 = vmul.f32 %v870, 0.5
        %v903 = vmul.f32 %v887, 1.442695
        %v904 = vpow.pop %v903
        %v905 = vmul.f32 %v888, 1.442695
        %v906 = vpow.pop %v905
        %v907 = vmul.f32 %v889, 1.442695
        %v908 = vpow.pop %v907
        %v909 = vmul.f32 %v890, 1.442695
        %v910 = vpow.pop %v909
        %v911 = vmul.f32 %v891, 1.442695
        %v912 = vpow.pop %v911
        %v913 = vmul.f32 %v892, 1.442695
        %v914 = vpow.pop %v913
        %v915 = vmul.f32 %v893, 1.442695
        %v916 = vpow.pop %v915
        %v917 = vmul.f32 %v894, 1.442695
        %v918 = vpow.pop %v917
        %v919 = vmul.f32 %v895, 1.442695
        %v920 = vpow.pop %v919
        %v921 = vmul.f32 %v896, 1.442695
        %v922 = vpow.pop %v921
        %v923 = vmul.f32 %v897, 1.442695
        %v924 = vpow.pop %v923
        %v925 = vmul.f32 %v898, 1.442695
        %v926 = vpow.pop %v925
        %v927 = vmul.f32 %v899, 1.442695
        %v928 = vpow.pop %v927
        %v929 = vmul.f32 %v900, 1.442695
        %v930 = vpow.pop %v929
        %v931 = vmul.f32 %v901, 1.442695
        %v932 = vpow.pop %v931
        %v933 = vmul.f32 %v902, 1.442695
        %v934 = vpow.pop %v933
        %v935 = vmul.f32 %v871, %v904
        %v936 = vmul.f32 %v872, %v906
        %v937 = vmul.f32 %v873, %v908
        %v938 = vmul.f32 %v874, %v910
        %v939 = vmul.f32 %v875, %v912
        %v940 = vmul.f32 %v876, %v914
        %v941 = vmul.f32 %v877, %v916
        %v942 = vmul.f32 %v878, %v918
        %v943 = vmul.f32 %v879, %v920
        %v944 = vmul.f32 %v880, %v922
        %v945 = vmul.f32 %v881, %v924
        %v946 = vmul.f32 %v882, %v926
        %v947 = vmul.f32 %v883, %v928
        %v948 = vmul.f32 %v884, %v930
        %v949 = vmul.f32 %v885, %v932
        %v950 = vmul.f32 %v886, %v934
        %v951 = vadd.f32 %v839, %v935
        %v952 = vadd.f32 %v840, %v936
        %v953 = vadd.f32 %v841, %v937
        %v954 = vadd.f32 %v842, %v938
        %v955 = vadd.f32 %v843, %v939
        %v956 = vadd.f32 %v844, %v940
        %v957 = vadd.f32 %v845, %v941
        %v958 = vadd.f32 %v846, %v942
        %v959 = vadd.f32 %v847, %v943
        %v960 = vadd.f32 %v848, %v944
        %v961 = vadd.f32 %v849, %v945
        %v962 = vadd.f32 %v850, %v946
        %v963 = vadd.f32 %v851, %v947
        %v964 = vadd.f32 %v852, %v948
        %v965 = vadd.f32 %v853, %v949
        %v966 = vadd.f32 %v854, %v950
        %v967 = vld [vmem:[%s10 + $0x2] sm:$0x1]
        %v968 = vld [vmem:[%s517 + $0x2] sm:$0x1]
        %v969 = vld [vmem:[%s11 + $0x2] sm:$0x1]
        %v970 = vmul.f32 %v969, 0.5
        %v971 = vmul.f32 %v970, 1.442695
        %v972 = vpow.pop %v971
        %v973 = vmul.f32 %v968, %v972
        %v974 = vadd.f32 %v967, %v973
        %v975 = vpack.c.bf16 %v838, %v838
        %v976 = vpack.c.bf16 %v952, %v951
        %v977 = vpack.c.bf16 %v954, %v953
        %v978 = vpack.c.bf16 %v956, %v955
        %v979 = vpack.c.bf16 %v958, %v957
        %v980 = vpack.c.bf16 %v960, %v959
        %v981 = vpack.c.bf16 %v962, %v961
        %v982 = vpack.c.bf16 %v964, %v963
        %v983 = vpack.c.bf16 %v966, %v965
        %v984 = vperm.slane %v974, 0
        %985 = vmatpush.bf16.msra.mxu0 %v983
        %986 = vmatpush.bf16.msra.mxu0 %v982
        %987 = vmatpush.bf16.msra.mxu0 %v981
        %988 = vmatpush.bf16.msra.mxu0 %v980
        %989 = vmatpush.bf16.msra.mxu0 %v979
        %990 = vmatpush.bf16.msra.mxu0 %v978
        %991 = vmatpush.bf16.msra.mxu0 %v977
        %992 = vmatpush.bf16.msra.mxu0 %v976
        %993 = vmatmul.bf16.gmra.mxu0 %v975
        %v994 = vpop.f32.mrf.mxu0
        %v995 = vadd.f32 %v984, %v994
        %v996 = vpop.f32.mrf.mxu0
        %997 = vdwg.mxu0
        %v998 = vlaneseq
        %v999 = vand.u32 %v998, 127
        %vm1000 = vcmp.lt.s32.totalorder %v999, 8
        %v1001 = vsel %vm1000, %v995, -1e+30
        %1002 = vmax.xlane.f32.xlu0 %v1001
        %v1003 = vpop.xlane.xlu0 %1002
        %v1004 = vsub.f32 %v1001, %v1003
        %v1005 = vmul.f32 %v1004, 1.442695
        %v1006 = vpow.pop %v1005
        %1007 = vadd.xlane.f32.xlu0 %v1006
        %v1008 = vpop.xlane.xlu0 %1007
        %v1009 = vrcp.pop %v1008
        %v1010 = vmul.f32 %v1006, %v1009
        %p1011 = scmp.eq.s32.totalorder %s30, 0
        // Predicated region
        $region73: #{dvcl_forward.3} parent=71 // pred_check
          %p1012 = pneg %p1011
        $region74: #{dvcl_forward.3} parent=71 // pred_check_branch
          %1014 = sbr.rel (%p1012) target = $region76
        $region75: #{dvcl_forward.3} parent=71 // pred_region
          %1015 = vst [vmem:[#allocation2] sm:$0xff] 0.0
        $region76: #{dvcl_forward.3} parent=71 // pred_fallthru
          _
        %v1016 = vld [vmem:[#allocation2] sm:$0xff]
        %v1017 = vadd.f32 %v1016, %v1010
        %1018 = vst [vmem:[#allocation2] sm:$0xff] %v1017
        %p1019 = scmp.eq.s32.totalorder %s30, 3
        // Predicated region
        $region77: #{dvcl_forward.3} parent=71 // pred_check
          %p1020 = pneg %p1019
        $region78: #{dvcl_forward.3} parent=71 // pred_check_branch
          %1022 = sbr.rel (%p1020) target = $region80
        $region79: #{dvcl_forward.3} parent=71 // pred_region
          %v1023 = vld [vmem:[#allocation2] sm:$0xff]
          %v1024 = vmul.f32 %v1023, 0.25
          %1025 = vst [vmem:[#allocation3] sm:$0xff] %v1024
        $region80: #{dvcl_forward.3} parent=71 // pred_fallthru
          _
        // Predicated region
        $region81: #{dvcl_forward.3} parent=71 // pred_check
          %p1026 = pneg %p353
        $region82: #{dvcl_forward.3} parent=71 // pred_check_branch
          %1028 = sbr.rel (%p1026) target = $region84
        $region83: #{dvcl_forward.3} parent=71 // pred_region
          %1030 = vsyncadd [#allocation4], 0
          %s1031 = smul.addr %s29, 8
          %s1032 = scalar_lea.hbm %s13, %s1031
          %s1034 = sshll.u32 [#allocation3], 4
          %s1035 = int_to_ptr.vmem [resolvable:$true] %s1034
          %s1036 = sshll.u32 %s1032, 4
          %s1037 = int_to_ptr.hbm [resolvable:$true] %s1036
          %1039 = dma.vmem_to_hbm [thread:$0]  %s1035, 128, %s1037, [#allocation4]
        $region84: #{dvcl_forward.3} parent=71 // pred_fallthru
          _
        // Predicated region
        $region85: #{dvcl_forward.3} parent=71 // pred_check
          %p1040 = pneg %p353
        $region86: #{dvcl_forward.3} parent=71 // pred_check_branch
          %1042 = sbr.rel (%p1040) target = $region88
        $region87: #{dvcl_forward.3} parent=71 // pred_region
          %1044 = dma.done [#allocation4], 128
        $region88: #{dvcl_forward.3} parent=71 // pred_fallthru
          _
      $region72: #{dvcl_forward.3} parent=5 // pred_fallthru
        _
      %p1045 = scmp.le.s32.totalorder 2, %s20
      // Predicated region
      $region89: #{dvcl_forward.3} parent=5 // pred_check
        %p1046 = pneg %p1045
      $region90: #{dvcl_forward.3} parent=5 // pred_check_branch
        %1048 = sbr.rel (%p1046) target = $region92
      $region91: #{dvcl_forward.3} parent=5 // pred_region
        %s1049 = ssub.s32 %s20, 2
      $region92: #{dvcl_forward.3} parent=5 // pred_fallthru
        _
    $region6: #{dvcl_forward.3} parent=1 // loop_footer
      %s24 = sadd.s32 1, %s20
    $region7: #{dvcl_forward.3} parent=1 // loop_footer_branch
      %19 = sbr.rel target = $region3
    $region8: #{dvcl_forward.3} parent=1 // loop_exit
      _
    %1050 = vsyncpa [#allocation4], 1
    %s1051 = scalar_lea.sflag [#allocation4], 1
    %1052 = vsyncpa %s1051, 1

</llo_original>
